<compile_context>
chip_gen: v7x
topology: tpu7x:2x2x1
jax: 0.10.0
libtpu: 0.0.40
codegen_flags: <defaults>
</compile_context>

<pallas_src>
import functools

import numpy as np

import jax
import jax.numpy as jnp
from jax import lax
from jax.experimental import pallas as pl
from jax.experimental.pallas import tpu as pltpu


# --------------------------------------------------------------------------------------
# kernel 1: fused im2col conv (k*k shifted-window MXU matmuls) + packed BN partial stats
# --------------------------------------------------------------------------------------
def _conv_stats_kernel(x_ref, w_ref, mask_ref, y_ref, stats_ref, *, k, wp, sw, dil, cout):
    # x_ref:    (1, Cin, Hp*Wp + slack)   flattened padded image (bf16 by default)
    # w_ref:    (k*k, Cout, Cin)
    # mask_ref: (1, Sw) f32 {0,1}         marks wide columns that are real conv outputs
    # y_ref:    (1, Cout, Sw)             wide conv output (bf16 by default)
    # stats_ref:(1, 2*Cout, 1) f32        [sum ; sum of squares] over valid columns
    acc = None
    for kh in range(k):
        for kw in range(k):
            d = dil * (kh * wp + kw)                                   # static lane offset
            xs = x_ref[0, :, d:d + sw]                                 # (Cin, Sw)
            wkk = w_ref[kh * k + kw, :, :]                             # (Cout, Cin)
            p = jnp.dot(wkk, xs, preferred_element_type=jnp.float32)   # MXU, f32 accumulate
            acc = p if acc is None else acc + p
    y_ref[0, :, :] = acc.astype(y_ref.dtype)

    # BN batch statistics from the f32 accumulator; the 0/1 mask removes the padded-width
    # wrap columns (and stride-skipped positions) so the sums are exact.
    ym = acc * mask_ref[...]                                           # (Cout, Sw)
    stats_ref[0, :cout, :] = jnp.sum(ym, axis=1, keepdims=True)        # sum(y)
    stats_ref[0, cout:, :] = jnp.sum(ym * acc, axis=1, keepdims=True)  # sum(y^2) (mask is 0/1)


# --------------------------------------------------------------------------------------
# kernel 2: y * scale + shift, ReLU   (scale/shift fold BN mean/var/gamma/beta)
# --------------------------------------------------------------------------------------
def _bn_relu_kernel(y_ref, scale_ref, shift_ref, o_ref):
    y = y_ref[0, :, :].astype(jnp.float32)
    o_ref[0, :, :] = jnp.maximum(y * scale_ref[...] + shift_ref[...], 0.0)


def basic_conv_forward(x, conv_w, conv_b, bn_gamma, bn_beta, *,
                       stride=1, padding=0, dilation=1, groups=1,
                       eps=1e-5, matmul_dtype=jnp.bfloat16):
    """Conv2d(stride, padding, dilation, groups=1) + BatchNorm2d(batch stats) + ReLU, NCHW."""
    del conv_b  # BatchNorm with batch statistics cancels any pre-BN channel bias exactly.
    assert groups == 1  # TODO(synk): grouped convolution not implemented in the kernel.
    n, cin, h, w = x.shape
    cout, cin_w, kh_, kw_ = conv_w.shape
    assert kh_ == kw_ and cin_w == cin
    k = int(kh_)
    act_dtype = jnp.float32 if matmul_dtype is None else matmul_dtype

    hp, wp = h + 2 * padding, w + 2 * padding
    oh1 = hp - dilation * (k - 1)            # stride-1 ("wide") output height
    ow1 = wp - dilation * (k - 1)
    assert oh1 >= 1 and ow1 >= 1
    oh = (oh1 - 1) // stride + 1             # true output size (matches PyTorch formula)
    ow = (ow1 - 1) // stride + 1
    sw = oh1 * wp                            # wide flat spatial extent per image
    d_max = dilation * ((k - 1) * wp + (k - 1))
    fp = hp * wp + d_max                     # flat image + slack so shifted loads stay in-bounds

    # ---- tiny XLA prework: pad + flatten + cast (single pass; no k*k im2col buffer) ----
    xp = jnp.pad(x, ((0, 0), (0, 0), (padding, padding), (padding, padding)))
    x_flat = xp.reshape(n, cin, hp * wp)
    if d_max:
        x_flat = jnp.pad(x_flat, ((0, 0), (0, 0), (0, d_max)))
    x_flat = x_flat.astype(act_dtype)
    w_kk = conv_w.transpose(2, 3, 0, 1).reshape(k * k, cout, cin).astype(act_dtype)

    # Static 0/1 mask over the wide columns that correspond to real conv outputs
    # (drops the Wp-OW wrap columns and, for stride>1, the skipped positions).
    q = np.arange(sw)
    r_, c_ = q // wp, q % wp
    valid = ((r_ % stride) == 0) & ((r_ // stride) < oh) & \
            ((c_ % stride) == 0) & ((c_ // stride) < ow)
    colmask = jnp.asarray(valid.astype(np.float32)).reshape(1, sw)

    cparams = pltpu.CompilerParams(
        dimension_semantics=("parallel",),
        # Per-step blocks are KB-scale here; 32 MiB gives ample double-buffer headroom on
        # v5e/v6e (128 MiB physical) and stays well inside v7x's 64 MiB.
        vmem_limit_bytes=32 * 1024 * 1024,
    )

    # ---- kernel 1: fused im2col conv + packed BN partial statistics ----
    y_wide, stats = pl.pallas_call(
        functools.partial(_conv_stats_kernel, k=k, wp=wp, sw=sw, dil=dilation, cout=cout),
        out_shape=(
            jax.ShapeDtypeStruct((n, cout, sw), act_dtype),
            jax.ShapeDtypeStruct((n, 2 * cout, 1), jnp.float32),
        ),
        grid_spec=pltpu.PrefetchScalarGridSpec(
            num_scalar_prefetch=0,
            grid=(n,),
            in_specs=[
                pl.BlockSpec((1, cin, fp), lambda i: (i, 0, 0)),
                pl.BlockSpec((k * k, cout, cin), lambda i: (0, 0, 0)),
                pl.BlockSpec((1, sw), lambda i: (0, 0)),
            ],
            out_specs=[
                pl.BlockSpec((1, cout, sw), lambda i: (i, 0, 0)),
                pl.BlockSpec((1, 2 * cout, 1), lambda i: (i, 0, 0)),
            ],
        ),
        compiler_params=cparams,
    )(x_flat, w_kk, colmask)

    # ---- tiny (Cout,)-sized BN finalize: batch stats -> scale/shift ----
    count = jnp.float32(n * oh * ow)
    tot = jnp.sum(stats[:, :cout, 0], axis=0)                      # (Cout,)
    tot_sq = jnp.sum(stats[:, cout:, 0], axis=0)                   # (Cout,)
    mean = tot / count
    var = jnp.maximum(tot_sq / count - mean * mean, 0.0)           # biased var (training BN)
    inv = lax.rsqrt(var + eps)
    g32 = bn_gamma.astype(jnp.float32)
    scale = (g32 * inv).reshape(cout, 1)
    shift = (bn_beta.astype(jnp.float32) - mean * g32 * inv).reshape(cout, 1)

    # ---- kernel 2: y*scale + shift, ReLU ----
    out_wide = pl.pallas_call(
        _bn_relu_kernel,
        out_shape=jax.ShapeDtypeStruct((n, cout, sw), jnp.float32),
        grid_spec=pltpu.PrefetchScalarGridSpec(
            num_scalar_prefetch=0,
            grid=(n,),
            in_specs=[
                pl.BlockSpec((1, cout, sw), lambda i: (i, 0, 0)),
                pl.BlockSpec((cout, 1), lambda i: (0, 0)),
                pl.BlockSpec((cout, 1), lambda i: (0, 0)),
            ],
            out_specs=pl.BlockSpec((1, cout, sw), lambda i: (i, 0, 0)),
        ),
        compiler_params=cparams,
    )(y_wide, scale, shift)

    # De-garbage: keep only the real output columns (cheap slice of the final output;
    # already in per-image NCHW order, so no transpose is needed).
    out_wide = out_wide.reshape(n, cout, oh1, wp)
    return out_wide[:, :, ::stride, ::stride][:, :, :oh, :ow]


def _reference(x, conv_w, conv_b, bn_gamma, bn_beta, *, stride, padding, dilation=1, eps=1e-5):
    y = lax.conv_general_dilated(
        x, conv_w, window_strides=(stride, stride),
        padding=[(padding, padding), (padding, padding)],
        rhs_dilation=(dilation, dilation),
        dimension_numbers=("NCHW", "OIHW", "NCHW"),
    ) + conv_b[None, :, None, None]
    mean = jnp.mean(y, axis=(0, 2, 3), keepdims=True)
    var = jnp.mean((y - mean) ** 2, axis=(0, 2, 3), keepdims=True)
    yhat = (y - mean) * lax.rsqrt(var + eps)
    out = yhat * bn_gamma[None, :, None, None] + bn_beta[None, :, None, None]
    return jnp.maximum(out, 0.0)


if __name__ == "__main__":
    key = jax.random.PRNGKey(0)
    k_x, k_w, k_b = jax.random.split(key, 3)

    # Basic_Conv(in_ch=4, out_ch=8, ksize=3, stride=1, padding=1)
    in_ch, out_ch, ksize, stride, padding = 4, 8, 3, 1, 1
    x = jax.random.normal(k_x, (2, in_ch, 16, 16), dtype=jnp.float32)
    conv_w = 0.1 * jax.random.normal(k_w, (out_ch, in_ch, ksize, ksize), dtype=jnp.float32)
    conv_b = 0.1 * jax.random.normal(k_b, (out_ch,), dtype=jnp.float32)
    bn_gamma = jnp.ones((out_ch,), dtype=jnp.float32)   # PyTorch BatchNorm2d default init
    bn_beta = jnp.zeros((out_ch,), dtype=jnp.float32)

    fwd = jax.jit(functools.partial(basic_conv_forward, stride=stride, padding=padding))
    out = jax.block_until_ready(fwd(x, conv_w, conv_b, bn_gamma, bn_beta))

    ref = _reference(x, conv_w, conv_b, bn_gamma, bn_beta, stride=stride, padding=padding)
    assert out.shape == ref.shape == (2, out_ch, 16, 16)
    # Tolerance accounts for bf16 matmul inputs / bf16 y storage (f32 accumulation & BN math).
    assert jnp.allclose(out, ref, atol=3e-2, rtol=3e-2), "mismatch vs JAX reference"

    print("KERNEL_OK")
</pallas_src>

<mosaic_0001>
module attributes {stable_mosaic.version = 11 : i64} {
  func.func @_conv_stats_kernel(%arg0: i32, %arg1: memref<1x4x362xbf16, #tpu.memory_space<vmem>>, %arg2: memref<9x8x4xbf16, #tpu.memory_space<vmem>>, %arg3: memref<1x288xf32, #tpu.memory_space<vmem>>, %arg4: memref<1x8x288xbf16, #tpu.memory_space<vmem>>, %arg5: memref<1x16x1xf32, #tpu.memory_space<vmem>>) attributes {dimension_semantics = [#tpu.dimension_semantics<parallel>], iteration_bounds = array<i64: 2>, scalar_prefetch = 0 : i64, scratch_operands = 0 : i64, tpu.core_type = #tpu.core_type<tc>, window_params = [{transform_indices = @transform_0, window_bounds = array<i64: 1, 4, 362>}, {pipeline_mode = #tpu.pipeline_mode<synchronous>, transform_indices = @transform_1, window_bounds = array<i64: 9, 8, 4>}, {pipeline_mode = #tpu.pipeline_mode<synchronous>, transform_indices = @transform_2, window_bounds = array<i64: 1, 288>}, {transform_indices = @transform_3, window_bounds = array<i64: 1, 8, 288>}, {transform_indices = @transform_4, window_bounds = array<i64: 1, 16, 1>}]} {
    %c0 = arith.constant 0 : index
    %c0_0 = arith.constant 0 : index
    %c0_1 = arith.constant 0 : index
    %0 = vector.load %arg1[%c0, %c0_0, %c0_1] : memref<1x4x362xbf16, #tpu.memory_space<vmem>>, vector<1x4x288xbf16>
    %1 = vector.shape_cast %0 : vector<1x4x288xbf16> to vector<4x288xbf16>
    %c0_2 = arith.constant 0 : index
    %c0_3 = arith.constant 0 : index
    %c0_4 = arith.constant 0 : index
    %2 = vector.load %arg2[%c0_2, %c0_3, %c0_4] : memref<9x8x4xbf16, #tpu.memory_space<vmem>>, vector<1x8x4xbf16>
    %3 = vector.shape_cast %2 : vector<1x8x4xbf16> to vector<8x4xbf16>
    %cst = arith.constant dense<0.000000e+00> : vector<8x288xf32>
    %4 = tpu.matmul %3, %1, %cst {dimension_numbers = #tpu.dot_dimension_numbers<[1], [0], [0], [1], [0, 0, 1, 1], [], []>} : vector<8x4xbf16>, vector<4x288xbf16>, vector<8x288xf32> -> vector<8x288xf32>
    %c0_5 = arith.constant 0 : index
    %c0_6 = arith.constant 0 : index
    %c1 = arith.constant 1 : index
    %5 = vector.load %arg1[%c0_5, %c0_6, %c1] : memref<1x4x362xbf16, #tpu.memory_space<vmem>>, vector<1x4x288xbf16>
    %6 = vector.shape_cast %5 : vector<1x4x288xbf16> to vector<4x288xbf16>
    %c1_7 = arith.constant 1 : index
    %c0_8 = arith.constant 0 : index
    %c0_9 = arith.constant 0 : index
    %7 = vector.load %arg2[%c1_7, %c0_8, %c0_9] : memref<9x8x4xbf16, #tpu.memory_space<vmem>>, vector<1x8x4xbf16>
    %8 = vector.shape_cast %7 : vector<1x8x4xbf16> to vector<8x4xbf16>
    %cst_10 = arith.constant dense<0.000000e+00> : vector<8x288xf32>
    %9 = tpu.matmul %8, %6, %cst_10 {dimension_numbers = #tpu.dot_dimension_numbers<[1], [0], [0], [1], [0, 0, 1, 1], [], []>} : vector<8x4xbf16>, vector<4x288xbf16>, vector<8x288xf32> -> vector<8x288xf32>
    %10 = arith.addf %4, %9 : vector<8x288xf32>
    %c0_11 = arith.constant 0 : index
    %c0_12 = arith.constant 0 : index
    %c2 = arith.constant 2 : index
    %11 = vector.load %arg1[%c0_11, %c0_12, %c2] : memref<1x4x362xbf16, #tpu.memory_space<vmem>>, vector<1x4x288xbf16>
    %12 = vector.shape_cast %11 : vector<1x4x288xbf16> to vector<4x288xbf16>
    %c2_13 = arith.constant 2 : index
    %c0_14 = arith.constant 0 : index
    %c0_15 = arith.constant 0 : index
    %13 = vector.load %arg2[%c2_13, %c0_14, %c0_15] : memref<9x8x4xbf16, #tpu.memory_space<vmem>>, vector<1x8x4xbf16>
    %14 = vector.shape_cast %13 : vector<1x8x4xbf16> to vector<8x4xbf16>
    %cst_16 = arith.constant dense<0.000000e+00> : vector<8x288xf32>
    %15 = tpu.matmul %14, %12, %cst_16 {dimension_numbers = #tpu.dot_dimension_numbers<[1], [0], [0], [1], [0, 0, 1, 1], [], []>} : vector<8x4xbf16>, vector<4x288xbf16>, vector<8x288xf32> -> vector<8x288xf32>
    %16 = arith.addf %10, %15 : vector<8x288xf32>
    %c0_17 = arith.constant 0 : index
    %c0_18 = arith.constant 0 : index
    %c18 = arith.constant 18 : index
    %17 = vector.load %arg1[%c0_17, %c0_18, %c18] : memref<1x4x362xbf16, #tpu.memory_space<vmem>>, vector<1x4x288xbf16>
    %18 = vector.shape_cast %17 : vector<1x4x288xbf16> to vector<4x288xbf16>
    %c3 = arith.constant 3 : index
    %c0_19 = arith.constant 0 : index
    %c0_20 = arith.constant 0 : index
    %19 = vector.load %arg2[%c3, %c0_19, %c0_20] : memref<9x8x4xbf16, #tpu.memory_space<vmem>>, vector<1x8x4xbf16>
    %20 = vector.shape_cast %19 : vector<1x8x4xbf16> to vector<8x4xbf16>
    %cst_21 = arith.constant dense<0.000000e+00> : vector<8x288xf32>
    %21 = tpu.matmul %20, %18, %cst_21 {dimension_numbers = #tpu.dot_dimension_numbers<[1], [0], [0], [1], [0, 0, 1, 1], [], []>} : vector<8x4xbf16>, vector<4x288xbf16>, vector<8x288xf32> -> vector<8x288xf32>
    %22 = arith.addf %16, %21 : vector<8x288xf32>
    %c0_22 = arith.constant 0 : index
    %c0_23 = arith.constant 0 : index
    %c19 = arith.constant 19 : index
    %23 = vector.load %arg1[%c0_22, %c0_23, %c19] : memref<1x4x362xbf16, #tpu.memory_space<vmem>>, vector<1x4x288xbf16>
    %24 = vector.shape_cast %23 : vector<1x4x288xbf16> to vector<4x288xbf16>
    %c4 = arith.constant 4 : index
    %c0_24 = arith.constant 0 : index
    %c0_25 = arith.constant 0 : index
    %25 = vector.load %arg2[%c4, %c0_24, %c0_25] : memref<9x8x4xbf16, #tpu.memory_space<vmem>>, vector<1x8x4xbf16>
    %26 = vector.shape_cast %25 : vector<1x8x4xbf16> to vector<8x4xbf16>
    %cst_26 = arith.constant dense<0.000000e+00> : vector<8x288xf32>
    %27 = tpu.matmul %26, %24, %cst_26 {dimension_numbers = #tpu.dot_dimension_numbers<[1], [0], [0], [1], [0, 0, 1, 1], [], []>} : vector<8x4xbf16>, vector<4x288xbf16>, vector<8x288xf32> -> vector<8x288xf32>
    %28 = arith.addf %22, %27 : vector<8x288xf32>
    %c0_27 = arith.constant 0 : index
    %c0_28 = arith.constant 0 : index
    %c20 = arith.constant 20 : index
    %29 = vector.load %arg1[%c0_27, %c0_28, %c20] : memref<1x4x362xbf16, #tpu.memory_space<vmem>>, vector<1x4x288xbf16>
    %30 = vector.shape_cast %29 : vector<1x4x288xbf16> to vector<4x288xbf16>
    %c5 = arith.constant 5 : index
    %c0_29 = arith.constant 0 : index
    %c0_30 = arith.constant 0 : index
    %31 = vector.load %arg2[%c5, %c0_29, %c0_30] : memref<9x8x4xbf16, #tpu.memory_space<vmem>>, vector<1x8x4xbf16>
    %32 = vector.shape_cast %31 : vector<1x8x4xbf16> to vector<8x4xbf16>
    %cst_31 = arith.constant dense<0.000000e+00> : vector<8x288xf32>
    %33 = tpu.matmul %32, %30, %cst_31 {dimension_numbers = #tpu.dot_dimension_numbers<[1], [0], [0], [1], [0, 0, 1, 1], [], []>} : vector<8x4xbf16>, vector<4x288xbf16>, vector<8x288xf32> -> vector<8x288xf32>
    %34 = arith.addf %28, %33 : vector<8x288xf32>
    %c0_32 = arith.constant 0 : index
    %c0_33 = arith.constant 0 : index
    %c36 = arith.constant 36 : index
    %35 = vector.load %arg1[%c0_32, %c0_33, %c36] : memref<1x4x362xbf16, #tpu.memory_space<vmem>>, vector<1x4x288xbf16>
    %36 = vector.shape_cast %35 : vector<1x4x288xbf16> to vector<4x288xbf16>
    %c6 = arith.constant 6 : index
    %c0_34 = arith.constant 0 : index
    %c0_35 = arith.constant 0 : index
    %37 = vector.load %arg2[%c6, %c0_34, %c0_35] : memref<9x8x4xbf16, #tpu.memory_space<vmem>>, vector<1x8x4xbf16>
    %38 = vector.shape_cast %37 : vector<1x8x4xbf16> to vector<8x4xbf16>
    %cst_36 = arith.constant dense<0.000000e+00> : vector<8x288xf32>
    %39 = tpu.matmul %38, %36, %cst_36 {dimension_numbers = #tpu.dot_dimension_numbers<[1], [0], [0], [1], [0, 0, 1, 1], [], []>} : vector<8x4xbf16>, vector<4x288xbf16>, vector<8x288xf32> -> vector<8x288xf32>
    %40 = arith.addf %34, %39 : vector<8x288xf32>
    %c0_37 = arith.constant 0 : index
    %c0_38 = arith.constant 0 : index
    %c37 = arith.constant 37 : index
    %41 = vector.load %arg1[%c0_37, %c0_38, %c37] : memref<1x4x362xbf16, #tpu.memory_space<vmem>>, vector<1x4x288xbf16>
    %42 = vector.shape_cast %41 : vector<1x4x288xbf16> to vector<4x288xbf16>
    %c7 = arith.constant 7 : index
    %c0_39 = arith.constant 0 : index
    %c0_40 = arith.constant 0 : index
    %43 = vector.load %arg2[%c7, %c0_39, %c0_40] : memref<9x8x4xbf16, #tpu.memory_space<vmem>>, vector<1x8x4xbf16>
    %44 = vector.shape_cast %43 : vector<1x8x4xbf16> to vector<8x4xbf16>
    %cst_41 = arith.constant dense<0.000000e+00> : vector<8x288xf32>
    %45 = tpu.matmul %44, %42, %cst_41 {dimension_numbers = #tpu.dot_dimension_numbers<[1], [0], [0], [1], [0, 0, 1, 1], [], []>} : vector<8x4xbf16>, vector<4x288xbf16>, vector<8x288xf32> -> vector<8x288xf32>
    %46 = arith.addf %40, %45 : vector<8x288xf32>
    %c0_42 = arith.constant 0 : index
    %c0_43 = arith.constant 0 : index
    %c38 = arith.constant 38 : index
    %47 = vector.load %arg1[%c0_42, %c0_43, %c38] : memref<1x4x362xbf16, #tpu.memory_space<vmem>>, vector<1x4x288xbf16>
    %48 = vector.shape_cast %47 : vector<1x4x288xbf16> to vector<4x288xbf16>
    %c8 = arith.constant 8 : index
    %c0_44 = arith.constant 0 : index
    %c0_45 = arith.constant 0 : index
    %49 = vector.load %arg2[%c8, %c0_44, %c0_45] : memref<9x8x4xbf16, #tpu.memory_space<vmem>>, vector<1x8x4xbf16>
    %50 = vector.shape_cast %49 : vector<1x8x4xbf16> to vector<8x4xbf16>
    %cst_46 = arith.constant dense<0.000000e+00> : vector<8x288xf32>
    %51 = tpu.matmul %50, %48, %cst_46 {dimension_numbers = #tpu.dot_dimension_numbers<[1], [0], [0], [1], [0, 0, 1, 1], [], []>} : vector<8x4xbf16>, vector<4x288xbf16>, vector<8x288xf32> -> vector<8x288xf32>
    %52 = arith.addf %46, %51 : vector<8x288xf32>
    %53 = arith.truncf %52 : vector<8x288xf32> to vector<8x288xbf16>
    %c0_47 = arith.constant 0 : index
    %c0_48 = arith.constant 0 : index
    %c0_49 = arith.constant 0 : index
    %54 = vector.load %arg4[%c0_47, %c0_48, %c0_49] : memref<1x8x288xbf16, #tpu.memory_space<vmem>>, vector<1x8x288xbf16>
    %55 = vector.shape_cast %54 : vector<1x8x288xbf16> to vector<8x288xbf16>
    %56 = vector.shape_cast %53 : vector<8x288xbf16> to vector<1x8x288xbf16>
    tpu.vector_store %arg4[%c0_47, %c0_48, %c0_49], %56 {strides = array<i32>} : memref<1x8x288xbf16, #tpu.memory_space<vmem>>, vector<1x8x288xbf16>,
    %c0_50 = arith.constant 0 : index
    %c0_51 = arith.constant 0 : index
    %57 = vector.load %arg3[%c0_50, %c0_51] : memref<1x288xf32, #tpu.memory_space<vmem>>, vector<1x288xf32>
    %58 = vector.broadcast %57 : vector<1x288xf32> to vector<8x288xf32>
    %59 = arith.mulf %52, %58 : vector<8x288xf32>
    %cst_52 = arith.constant dense<0.000000e+00> : vector<8xf32>
    %60 = vector.multi_reduction <add>, %59, %cst_52 [1] : vector<8x288xf32> to vector<8xf32>
    %61 = vector.shape_cast %60 : vector<8xf32> to vector<8x1xf32>
    %c0_53 = arith.constant 0 : index
    %c0_54 = arith.constant 0 : index
    %c0_55 = arith.constant 0 : index
    %62 = vector.load %arg5[%c0_53, %c0_54, %c0_55] : memref<1x16x1xf32, #tpu.memory_space<vmem>>, vector<1x8x1xf32>
    %63 = vector.shape_cast %62 : vector<1x8x1xf32> to vector<8x1xf32>
    %64 = vector.shape_cast %61 : vector<8x1xf32> to vector<1x8x1xf32>
    tpu.vector_store %arg5[%c0_53, %c0_54, %c0_55], %64 {strides = array<i32>} : memref<1x16x1xf32, #tpu.memory_space<vmem>>, vector<1x8x1xf32>,
    %65 = arith.mulf %59, %52 : vector<8x288xf32>
    %cst_56 = arith.constant dense<0.000000e+00> : vector<8xf32>
    %66 = vector.multi_reduction <add>, %65, %cst_56 [1] : vector<8x288xf32> to vector<8xf32>
    %67 = vector.shape_cast %66 : vector<8xf32> to vector<8x1xf32>
    %c0_57 = arith.constant 0 : index
    %c8_58 = arith.constant 8 : index
    %c0_59 = arith.constant 0 : index
    %68 = vector.load %arg5[%c0_57, %c8_58, %c0_59] : memref<1x16x1xf32, #tpu.memory_space<vmem>>, vector<1x8x1xf32>
    %69 = vector.shape_cast %68 : vector<1x8x1xf32> to vector<8x1xf32>
    %70 = vector.shape_cast %67 : vector<8x1xf32> to vector<1x8x1xf32>
    tpu.vector_store %arg5[%c0_57, %c8_58, %c0_59], %70 {strides = array<i32>} : memref<1x16x1xf32, #tpu.memory_space<vmem>>, vector<1x8x1xf32>,
    return
  }
  func.func @transform_0(%arg0: i32) -> (i32, i32, i32) {
    %c0_i32 = arith.constant 0 : i32
    %c0_i32_0 = arith.constant 0 : i32
    %c0_i32_1 = arith.constant 0 : i32
    return %arg0, %c0_i32, %c0_i32_0 : i32, i32, i32
  }
  func.func @transform_1(%arg0: i32) -> (i32, i32, i32) {
    %c0_i32 = arith.constant 0 : i32
    %c0_i32_0 = arith.constant 0 : i32
    %c0_i32_1 = arith.constant 0 : i32
    %c0_i32_2 = arith.constant 0 : i32
    return %c0_i32, %c0_i32_0, %c0_i32_1 : i32, i32, i32
  }
  func.func @transform_2(%arg0: i32) -> (i32, i32) {
    %c0_i32 = arith.constant 0 : i32
    %c0_i32_0 = arith.constant 0 : i32
    %c0_i32_1 = arith.constant 0 : i32
    return %c0_i32, %c0_i32_0 : i32, i32
  }
  func.func @transform_3(%arg0: i32) -> (i32, i32, i32) {
    %c0_i32 = arith.constant 0 : i32
    %c0_i32_0 = arith.constant 0 : i32
    %c0_i32_1 = arith.constant 0 : i32
    return %arg0, %c0_i32, %c0_i32_0 : i32, i32, i32
  }
  func.func @transform_4(%arg0: i32) -> (i32, i32, i32) {
    %c0_i32 = arith.constant 0 : i32
    %c0_i32_0 = arith.constant 0 : i32
    %c0_i32_1 = arith.constant 0 : i32
    return %arg0, %c0_i32, %c0_i32_0 : i32, i32, i32
  }
}

module attributes {stable_mosaic.version = 11 : i64} {
  func.func @_bn_relu_kernel(%arg0: i32, %arg1: memref<1x8x288xbf16, #tpu.memory_space<vmem>>, %arg2: memref<8x1xf32, #tpu.memory_space<vmem>>, %arg3: memref<8x1xf32, #tpu.memory_space<vmem>>, %arg4: memref<1x8x288xf32, #tpu.memory_space<vmem>>) attributes {dimension_semantics = [#tpu.dimension_semantics<parallel>], iteration_bounds = array<i64: 2>, scalar_prefetch = 0 : i64, scratch_operands = 0 : i64, tpu.core_type = #tpu.core_type<tc>, window_params = [{transform_indices = @transform_0, window_bounds = array<i64: 1, 8, 288>}, {pipeline_mode = #tpu.pipeline_mode<synchronous>, transform_indices = @transform_1, window_bounds = array<i64: 8, 1>}, {pipeline_mode = #tpu.pipeline_mode<synchronous>, transform_indices = @transform_2, window_bounds = array<i64: 8, 1>}, {transform_indices = @transform_3, window_bounds = array<i64: 1, 8, 288>}]} {
    %c0 = arith.constant 0 : index
    %c0_0 = arith.constant 0 : index
    %c0_1 = arith.constant 0 : index
    %0 = vector.load %arg1[%c0, %c0_0, %c0_1] : memref<1x8x288xbf16, #tpu.memory_space<vmem>>, vector<1x8x288xbf16>
    %1 = vector.shape_cast %0 : vector<1x8x288xbf16> to vector<8x288xbf16>
    %2 = arith.extf %1 : vector<8x288xbf16> to vector<8x288xf32>
    %c0_2 = arith.constant 0 : index
    %c0_3 = arith.constant 0 : index
    %3 = vector.load %arg2[%c0_2, %c0_3] : memref<8x1xf32, #tpu.memory_space<vmem>>, vector<8x1xf32>
    %4 = vector.broadcast %3 : vector<8x1xf32> to vector<8x288xf32>
    %5 = arith.mulf %2, %4 : vector<8x288xf32>
    %c0_4 = arith.constant 0 : index
    %c0_5 = arith.constant 0 : index
    %6 = vector.load %arg3[%c0_4, %c0_5] : memref<8x1xf32, #tpu.memory_space<vmem>>, vector<8x1xf32>
    %7 = vector.broadcast %6 : vector<8x1xf32> to vector<8x288xf32>
    %8 = arith.addf %5, %7 : vector<8x288xf32>
    %cst = arith.constant 0.000000e+00 : f32
    %9 = vector.broadcast %cst : f32 to vector<8x288xf32>
    %10 = arith.maximumf %8, %9 : vector<8x288xf32>
    %c0_6 = arith.constant 0 : index
    %c0_7 = arith.constant 0 : index
    %c0_8 = arith.constant 0 : index
    %11 = vector.load %arg4[%c0_6, %c0_7, %c0_8] : memref<1x8x288xf32, #tpu.memory_space<vmem>>, vector<1x8x288xf32>
    %12 = vector.shape_cast %11 : vector<1x8x288xf32> to vector<8x288xf32>
    %13 = vector.shape_cast %10 : vector<8x288xf32> to vector<1x8x288xf32>
    tpu.vector_store %arg4[%c0_6, %c0_7, %c0_8], %13 {strides = array<i32>} : memref<1x8x288xf32, #tpu.memory_space<vmem>>, vector<1x8x288xf32>,
    return
  }
  func.func @transform_0(%arg0: i32) -> (i32, i32, i32) {
    %c0_i32 = arith.constant 0 : i32
    %c0_i32_0 = arith.constant 0 : i32
    %c0_i32_1 = arith.constant 0 : i32
    return %arg0, %c0_i32, %c0_i32_0 : i32, i32, i32
  }
  func.func @transform_1(%arg0: i32) -> (i32, i32) {
    %c0_i32 = arith.constant 0 : i32
    %c0_i32_0 = arith.constant 0 : i32
    %c0_i32_1 = arith.constant 0 : i32
    return %c0_i32, %c0_i32_0 : i32, i32
  }
  func.func @transform_2(%arg0: i32) -> (i32, i32) {
    %c0_i32 = arith.constant 0 : i32
    %c0_i32_0 = arith.constant 0 : i32
    %c0_i32_1 = arith.constant 0 : i32
    return %c0_i32, %c0_i32_0 : i32, i32
  }
  func.func @transform_3(%arg0: i32) -> (i32, i32, i32) {
    %c0_i32 = arith.constant 0 : i32
    %c0_i32_0 = arith.constant 0 : i32
    %c0_i32_1 = arith.constant 0 : i32
    return %arg0, %c0_i32, %c0_i32_0 : i32, i32, i32
  }
}

</mosaic_0001>

<llo_original>
// kernel: basic_conv_forward.3
$region0: #{basic_conv_forward.3}
  #allocation0 [shape = 'u32[]', space=smem, size = 0x4, offset = 0x4, fixed_abs, tag = 'smem constant byte address 0x4 - core index']
  #allocation1 [shape = 'u32[144,128]{1,0:T(1,128)}', space=vmem, size = 0x12000, scoped, tag = 'internal scratch']
  %s0 = inlined_call_operand.vmem [shape: bf16[2,8,288], index: 0, kind: input, shape index: {}]
  %s1 = inlined_call_operand.vmem [shape: f32[8,1], index: 1, kind: input, shape index: {}]
  %s2 = inlined_call_operand.vmem [shape: f32[8,1], index: 2, kind: input, shape index: {}]
  %s3 = inlined_call_operand.vmem [shape: f32[2,8,288], index: 3, kind: output, shape index: {}]
  %s4 = sld [smem:[#allocation0]]
  $region45: #{basic_conv_forward.3} parent=0
    _
  %s6 = ssub.s32 1, %s4
  %s7 = scalar_select 0, %s6, %s4
  loop: start=0, step=1, limit=4
  $region2: #{basic_conv_forward.3} parent=0 // loop_pre_header
    _
  $region3: #{basic_conv_forward.3} parent=0 // loop_header
    %s9 = sphi 0, %s13
    %p10 = scmp.ge.s32.totalorder %s9, 4
    %s19 = sphi 0, %s21
    %s22 = sphi 0, %s19
    %s23 = sphi 0, %s22
    %s39 = sphi 0, %s23
    %s43 = sphi 0, %s43
    %s45 = sphi 0, %s43
    %s46 = sphi 0, %s45
    %s60 = sphi 0, %s46
    %s64 = sphi 0, %s64
    %s66 = sphi 0, %s64
    %s67 = sphi 0, %s66
    %s81 = sphi 0, %s67
    %s87 = sphi 0, %s89
    %s90 = sphi 0, %s87
    %s91 = sphi 0, %s90
    %s107 = sphi 0, %s91
  $region4: #{basic_conv_forward.3} parent=0 // loop_header_branch
    %12 = sbr.rel (%p10) target = $region8
  $region5: #{basic_conv_forward.3} parent=0 // loop_body
    %s14 = ssub.s32 %s9, 1
    %s15 = ssub.s32 %s9, 2
    %s16 = sadd.s32 %s9, 1
    %s17 = ssub.s32 %s9, %s16
    %p18 = scmp.eq.s32.totalorder %s17, 0
    %s20 = sadd.s32 %s19, 1
    %s21 = scalar_select %p18, %s19, %s20
    %p24 = pneg %p18
    %p25 = scmp.eq.s32.totalorder %s9, 1
    %p26 = por %p24, %p25
    %p27 = scmp.ne.s32.totalorder %s19, %s22
    %p28 = scmp.eq.s32.totalorder %s9, 0
    %p29 = por %p27, %p28
    %p30 = scmp.ne.s32.totalorder %s19, %s22
    %p31 = scmp.eq.s32.totalorder %s14, 1
    %p32 = por %p30, %p31
    %p33 = scmp.ne.s32.totalorder %s22, %s23
    %p34 = scmp.eq.s32.totalorder %s14, 0
    %p35 = por %p33, %p34
    %p36 = scmp.ne.s32.totalorder %s22, %s23
    %p37 = scmp.eq.s32.totalorder %s15, 1
    %p38 = por %p36, %p37
    %p40 = scmp.ne.s32.totalorder %s23, %s39
    %p41 = scmp.eq.s32.totalorder %s15, 0
    %p42 = por %p40, %p41
    %s44 = sadd.s32 %s43, 1
    %p47 = scmp.eq.s32.totalorder %s9, 1
    %p48 = scmp.ne.s32.totalorder %s43, %s45
    %p49 = scmp.eq.s32.totalorder %s9, 0
    %p50 = por %p48, %p49
    %p51 = scmp.ne.s32.totalorder %s43, %s45
    %p52 = scmp.eq.s32.totalorder %s14, 1
    %p53 = por %p51, %p52
    %p54 = scmp.ne.s32.totalorder %s45, %s46
    %p55 = scmp.eq.s32.totalorder %s14, 0
    %p56 = por %p54, %p55
    %p57 = scmp.ne.s32.totalorder %s45, %s46
    %p58 = scmp.eq.s32.totalorder %s15, 1
    %p59 = por %p57, %p58
    %p61 = scmp.ne.s32.totalorder %s46, %s60
    %p62 = scmp.eq.s32.totalorder %s15, 0
    %p63 = por %p61, %p62
    %s65 = sadd.s32 %s64, 1
    %p68 = scmp.eq.s32.totalorder %s9, 1
    %p69 = scmp.ne.s32.totalorder %s64, %s66
    %p70 = scmp.eq.s32.totalorder %s9, 0
    %p71 = por %p69, %p70
    %p72 = scmp.ne.s32.totalorder %s64, %s66
    %p73 = scmp.eq.s32.totalorder %s14, 1
    %p74 = por %p72, %p73
    %p75 = scmp.ne.s32.totalorder %s66, %s67
    %p76 = scmp.eq.s32.totalorder %s14, 0
    %p77 = por %p75, %p76
    %p78 = scmp.ne.s32.totalorder %s66, %s67
    %p79 = scmp.eq.s32.totalorder %s15, 1
    %p80 = por %p78, %p79
    %p82 = scmp.ne.s32.totalorder %s67, %s81
    %p83 = scmp.eq.s32.totalorder %s15, 0
    %p84 = por %p82, %p83
    %s85 = ssub.s32 %s9, %s16
    %p86 = scmp.eq.s32.totalorder %s85, 0
    %s88 = sadd.s32 %s87, 1
    %s89 = scalar_select %p86, %s87, %s88
    %p92 = pneg %p86
    %p93 = scmp.eq.s32.totalorder %s9, 1
    %p94 = por %p92, %p93
    %p95 = scmp.ne.s32.totalorder %s87, %s90
    %p96 = scmp.eq.s32.totalorder %s9, 0
    %p97 = por %p95, %p96
    %p98 = scmp.ne.s32.totalorder %s87, %s90
    %p99 = scmp.eq.s32.totalorder %s14, 1
    %p100 = por %p98, %p99
    %p101 = scmp.ne.s32.totalorder %s90, %s91
    %p102 = scmp.eq.s32.totalorder %s14, 0
    %p103 = por %p101, %p102
    %p104 = scmp.ne.s32.totalorder %s90, %s91
    %p105 = scmp.eq.s32.totalorder %s15, 1
    %p106 = por %p104, %p105
    %p108 = scmp.ne.s32.totalorder %s91, %s107
    %p109 = scmp.eq.s32.totalorder %s15, 0
    %p110 = por %p108, %p109
    %p111 = scmp.le.s32.totalorder 1, %s9
    %p112 = scmp.lt.s32.totalorder %s9, 3
    %p113 = pnand %p111, %p112
    %p114 = pneg %p113
    // Predicated region
    $region9: #{basic_conv_forward.3} parent=5 // pred_check
      _
    $region10: #{basic_conv_forward.3} parent=5 // pred_check_branch
      %116 = sbr.rel (%p113) target = $region12
    $region11: #{basic_conv_forward.3} parent=5 // pred_region
      %s117 = ssub.s32 %s9, 1
      // Predicated region
      $region13: #{basic_conv_forward.3} parent=11 // pred_check
        %p118 = pneg %p56
      $region14: #{basic_conv_forward.3} parent=11 // pred_check_branch
        %120 = sbr.rel (%p118) target = $region16
      $region15: #{basic_conv_forward.3} parent=11 // pred_region
        _
      $region16: #{basic_conv_forward.3} parent=11 // pred_fallthru
        _
      // Predicated region
      $region17: #{basic_conv_forward.3} parent=11 // pred_check
        %p121 = pneg %p77
      $region18: #{basic_conv_forward.3} parent=11 // pred_check_branch
        %123 = sbr.rel (%p121) target = $region20
      $region19: #{basic_conv_forward.3} parent=11 // pred_region
        _
      $region20: #{basic_conv_forward.3} parent=11 // pred_fallthru
        _
    $region12: #{basic_conv_forward.3} parent=5 // pred_fallthru
      _
    %p124 = scmp.lt.s32.totalorder %s9, 2
    // Predicated region
    $region21: #{basic_conv_forward.3} parent=5 // pred_check
      %p125 = pneg %p124
    $region22: #{basic_conv_forward.3} parent=5 // pred_check_branch
      %127 = sbr.rel (%p125) target = $region24
    $region23: #{basic_conv_forward.3} parent=5 // pred_region
      // Predicated region
      $region25: #{basic_conv_forward.3} parent=23 // pred_check
        %p128 = pneg %p29
      $region26: #{basic_conv_forward.3} parent=23 // pred_check_branch
        %130 = sbr.rel (%p128) target = $region28
      $region27: #{basic_conv_forward.3} parent=23 // pred_region
        %p131 = scmp.lt.s32.totalorder %s9, 1
        %s132 = scalar_select %p131, %s9, 1
        %s133 = smul.addr %s132, 3
        %s134 = smul.addr %s133, 4
        %s135 = scalar_lea.vmem %s0, %s134
      $region28: #{basic_conv_forward.3} parent=23 // pred_fallthru
        _
    $region24: #{basic_conv_forward.3} parent=5 // pred_fallthru
      _
    %p136 = scmp.le.s32.totalorder 1, %s9
    %p137 = scmp.lt.s32.totalorder %s9, 3
    %p138 = pnand %p136, %p137
    %p139 = pneg %p138
    // Predicated region
    $region29: #{basic_conv_forward.3} parent=5 // pred_check
      _
    $region30: #{basic_conv_forward.3} parent=5 // pred_check_branch
      %141 = sbr.rel (%p138) target = $region32
    $region31: #{basic_conv_forward.3} parent=5 // pred_region
      %s142 = ssub.s32 %s9, 1
      %p143 = scmp.lt.s32.totalorder %s14, 1
      %s144 = scalar_select %p143, %s14, 1
      %s145 = smul.addr %s144, 3
      %s146 = smul.addr %s145, 4
      %s147 = scalar_lea.vmem %s0, %s146
      %p148 = pneg %p35
      %p149 = pneg %p32
      %p150 = pneg %p56
      %p151 = pneg %p53
      %p152 = pneg %p77
      %p153 = pneg %p74
      %p154 = pneg %p103
      %p155 = pneg %p100
      %p156 = scmp.lt.s32.totalorder %s14, 1
      %s157 = scalar_select %p156, %s14, 1
      %s158 = smul.addr %s157, 3
      %s159 = smul.addr %s158, 8
      %s160 = scalar_lea.vmem %s3, %s159
      %p161 = scmp.lt.s32.totalorder %s14, 1
      %s162 = scalar_select %p161, %s14, 1
      %s163 = smul.addr %s162, 3
      %s164 = smul.addr %s163, 4
      %s165 = scalar_lea.vmem %s0, %s164
      %p166 = scmp.lt.s32.totalorder %s14, 1
      %s167 = scalar_select %p166, %s14, 1
      %s168 = smul.addr %s167, 3
      %s169 = smul.addr %s168, 8
      %s170 = scalar_lea.vmem %s3, %s169
      %v171 = vld [vmem:[%s165] sm:$0xff]
      %v172 = vld [vmem:[%s165 + $0x8] sm:$0xf]
      %v173 = vunpack.c.l.bf16 %v171
      %v174 = vunpack.c.h.bf16 %v171
      %v175 = vunpack.c.l.bf16 %v172
      %v176 = vld [vmem:[%s1] sm:$0xff]
      %178 = vset.pattern.permute.xlu0 0
      %179 = vperm.xlu0 %178, %v176
      %v180 = vpop.permute.xlu0 %179
      %v182 = vmul.f32 %v173, %v180
      %v183 = vmul.f32 %v174, %v180
      %v184 = vmul.f32 %v175, %v180
      %v185 = vld [vmem:[%s2] sm:$0xff]
      %187 = vset.pattern.permute.xlu0 0
      %188 = vperm.xlu0 %187, %v185
      %v189 = vpop.permute.xlu0 %188
      %v191 = vadd.f32 %v182, %v189
      %v192 = vadd.f32 %v183, %v189
      %v193 = vadd.f32 %v184, %v189
      %v194 = vmax.f32 %v191, 0.0
      %v195 = vmax.f32 %v192, 0.0
      %v196 = vmax.f32 %v193, 0.0
      %197 = vst [vmem:[%s170] sm:$0xff] %v194
      %198 = vst [vmem:[%s170 + $0x8] sm:$0xff] %v195
      %vm199 = vcmask 261120
      %200 = vst.msk [vmem:[%s170 + $0x10] sm:$0xff] %vm199, %v196
      %p201 = scmp.lt.s32.totalorder %s14, 1
      %s202 = scalar_select %p201, %s14, 1
      %s203 = smul.addr %s202, 3
      %s204 = smul.addr %s203, 8
      %s205 = scalar_lea.vmem %s3, %s204
      // Predicated region
      $region33: #{basic_conv_forward.3} parent=31 // pred_check
        %p206 = pneg %p100
      $region34: #{basic_conv_forward.3} parent=31 // pred_check_branch
        %208 = sbr.rel (%p206) target = $region36
      $region35: #{basic_conv_forward.3} parent=31 // pred_region
        _
      $region36: #{basic_conv_forward.3} parent=31 // pred_fallthru
        _
    $region32: #{basic_conv_forward.3} parent=5 // pred_fallthru
      _
    %p209 = scmp.le.s32.totalorder 2, %s9
    // Predicated region
    $region37: #{basic_conv_forward.3} parent=5 // pred_check
      %p210 = pneg %p209
    $region38: #{basic_conv_forward.3} parent=5 // pred_check_branch
      %212 = sbr.rel (%p210) target = $region40
    $region39: #{basic_conv_forward.3} parent=5 // pred_region
      %s213 = ssub.s32 %s9, 2
      // Predicated region
      $region41: #{basic_conv_forward.3} parent=39 // pred_check
        %p214 = pneg %p106
      $region42: #{basic_conv_forward.3} parent=39 // pred_check_branch
        %216 = sbr.rel (%p214) target = $region44
      $region43: #{basic_conv_forward.3} parent=39 // pred_region
        %p217 = scmp.lt.s32.totalorder %s15, 1
        %s218 = scalar_select %p217, %s15, 1
        %s219 = smul.addr %s218, 3
        %s220 = smul.addr %s219, 8
        %s221 = scalar_lea.vmem %s3, %s220
      $region44: #{basic_conv_forward.3} parent=39 // pred_fallthru
        _
    $region40: #{basic_conv_forward.3} parent=5 // pred_fallthru
      _
  $region6: #{basic_conv_forward.3} parent=0 // loop_footer
    %s13 = sadd.s32 1, %s9
  $region7: #{basic_conv_forward.3} parent=0 // loop_footer_branch
    %8 = sbr.rel target = $region3
  $region8: #{basic_conv_forward.3} parent=0 // loop_exit
    _

// kernel: basic_conv_forward.2
$region0: #{basic_conv_forward.2}
  #allocation0 [shape = 'u32[]', space=smem, size = 0x4, offset = 0x4, fixed_abs, tag = 'smem constant byte address 0x4 - core index']
  #allocation1 [shape = 'u32[144,128]{1,0:T(1,128)}', space=vmem, size = 0x12000, scoped, tag = 'internal scratch']
  %s0 = inlined_call_operand.vmem [shape: bf16[2,4,362], index: 0, kind: input, shape index: {}]
  %s1 = inlined_call_operand.vmem [shape: bf16[9,8,4], index: 1, kind: input, shape index: {}]
  %s2 = inlined_call_operand.vmem [shape: f32[1,288], index: 2, kind: input, shape index: {}]
  %s3 = inlined_call_operand.vmem [shape: bf16[2,8,288], index: 3, kind: output, shape index: {0}]
  %s4 = inlined_call_operand.vmem [shape: f32[2,16,1], index: 4, kind: output, shape index: {1}]
  %5 = xla_tuple %s3, %s4
  %s6 = sld [smem:[#allocation0]]
  $region53: #{basic_conv_forward.2} parent=0
    _
  %s8 = ssub.s32 1, %s6
  %s9 = scalar_select 0, %s8, %s6
  loop: start=0, step=1, limit=4
  $region2: #{basic_conv_forward.2} parent=0 // loop_pre_header
    _
  $region3: #{basic_conv_forward.2} parent=0 // loop_header
    %s11 = sphi 0, %s15
    %p12 = scmp.ge.s32.totalorder %s11, 4
    %s21 = sphi 0, %s23
    %s24 = sphi 0, %s21
    %s25 = sphi 0, %s24
    %s41 = sphi 0, %s25
    %s45 = sphi 0, %s45
    %s47 = sphi 0, %s45
    %s48 = sphi 0, %s47
    %s62 = sphi 0, %s48
    %s66 = sphi 0, %s66
    %s68 = sphi 0, %s66
    %s69 = sphi 0, %s68
    %s83 = sphi 0, %s69
    %s89 = sphi 0, %s91
    %s92 = sphi 0, %s89
    %s93 = sphi 0, %s92
    %s109 = sphi 0, %s93
    %s115 = sphi 0, %s117
    %s118 = sphi 0, %s115
    %s119 = sphi 0, %s118
    %s135 = sphi 0, %s119
  $region4: #{basic_conv_forward.2} parent=0 // loop_header_branch
    %14 = sbr.rel (%p12) target = $region8
  $region5: #{basic_conv_forward.2} parent=0 // loop_body
    %s16 = ssub.s32 %s11, 1
    %s17 = ssub.s32 %s11, 2
    %s18 = sadd.s32 %s11, 1
    %s19 = ssub.s32 %s11, %s18
    %p20 = scmp.eq.s32.totalorder %s19, 0
    %s22 = sadd.s32 %s21, 1
    %s23 = scalar_select %p20, %s21, %s22
    %p26 = pneg %p20
    %p27 = scmp.eq.s32.totalorder %s11, 1
    %p28 = por %p26, %p27
    %p29 = scmp.ne.s32.totalorder %s21, %s24
    %p30 = scmp.eq.s32.totalorder %s11, 0
    %p31 = por %p29, %p30
    %p32 = scmp.ne.s32.totalorder %s21, %s24
    %p33 = scmp.eq.s32.totalorder %s16, 1
    %p34 = por %p32, %p33
    %p35 = scmp.ne.s32.totalorder %s24, %s25
    %p36 = scmp.eq.s32.totalorder %s16, 0
    %p37 = por %p35, %p36
    %p38 = scmp.ne.s32.totalorder %s24, %s25
    %p39 = scmp.eq.s32.totalorder %s17, 1
    %p40 = por %p38, %p39
    %p42 = scmp.ne.s32.totalorder %s25, %s41
    %p43 = scmp.eq.s32.totalorder %s17, 0
    %p44 = por %p42, %p43
    %s46 = sadd.s32 %s45, 1
    %p49 = scmp.eq.s32.totalorder %s11, 1
    %p50 = scmp.ne.s32.totalorder %s45, %s47
    %p51 = scmp.eq.s32.totalorder %s11, 0
    %p52 = por %p50, %p51
    %p53 = scmp.ne.s32.totalorder %s45, %s47
    %p54 = scmp.eq.s32.totalorder %s16, 1
    %p55 = por %p53, %p54
    %p56 = scmp.ne.s32.totalorder %s47, %s48
    %p57 = scmp.eq.s32.totalorder %s16, 0
    %p58 = por %p56, %p57
    %p59 = scmp.ne.s32.totalorder %s47, %s48
    %p60 = scmp.eq.s32.totalorder %s17, 1
    %p61 = por %p59, %p60
    %p63 = scmp.ne.s32.totalorder %s48, %s62
    %p64 = scmp.eq.s32.totalorder %s17, 0
    %p65 = por %p63, %p64
    %s67 = sadd.s32 %s66, 1
    %p70 = scmp.eq.s32.totalorder %s11, 1
    %p71 = scmp.ne.s32.totalorder %s66, %s68
    %p72 = scmp.eq.s32.totalorder %s11, 0
    %p73 = por %p71, %p72
    %p74 = scmp.ne.s32.totalorder %s66, %s68
    %p75 = scmp.eq.s32.totalorder %s16, 1
    %p76 = por %p74, %p75
    %p77 = scmp.ne.s32.totalorder %s68, %s69
    %p78 = scmp.eq.s32.totalorder %s16, 0
    %p79 = por %p77, %p78
    %p80 = scmp.ne.s32.totalorder %s68, %s69
    %p81 = scmp.eq.s32.totalorder %s17, 1
    %p82 = por %p80, %p81
    %p84 = scmp.ne.s32.totalorder %s69, %s83
    %p85 = scmp.eq.s32.totalorder %s17, 0
    %p86 = por %p84, %p85
    %s87 = ssub.s32 %s11, %s18
    %p88 = scmp.eq.s32.totalorder %s87, 0
    %s90 = sadd.s32 %s89, 1
    %s91 = scalar_select %p88, %s89, %s90
    %p94 = pneg %p88
    %p95 = scmp.eq.s32.totalorder %s11, 1
    %p96 = por %p94, %p95
    %p97 = scmp.ne.s32.totalorder %s89, %s92
    %p98 = scmp.eq.s32.totalorder %s11, 0
    %p99 = por %p97, %p98
    %p100 = scmp.ne.s32.totalorder %s89, %s92
    %p101 = scmp.eq.s32.totalorder %s16, 1
    %p102 = por %p100, %p101
    %p103 = scmp.ne.s32.totalorder %s92, %s93
    %p104 = scmp.eq.s32.totalorder %s16, 0
    %p105 = por %p103, %p104
    %p106 = scmp.ne.s32.totalorder %s92, %s93
    %p107 = scmp.eq.s32.totalorder %s17, 1
    %p108 = por %p106, %p107
    %p110 = scmp.ne.s32.totalorder %s93, %s109
    %p111 = scmp.eq.s32.totalorder %s17, 0
    %p112 = por %p110, %p111
    %s113 = ssub.s32 %s11, %s18
    %p114 = scmp.eq.s32.totalorder %s113, 0
    %s116 = sadd.s32 %s115, 1
    %s117 = scalar_select %p114, %s115, %s116
    %p120 = pneg %p114
    %p121 = scmp.eq.s32.totalorder %s11, 1
    %p122 = por %p120, %p121
    %p123 = scmp.ne.s32.totalorder %s115, %s118
    %p124 = scmp.eq.s32.totalorder %s11, 0
    %p125 = por %p123, %p124
    %p126 = scmp.ne.s32.totalorder %s115, %s118
    %p127 = scmp.eq.s32.totalorder %s16, 1
    %p128 = por %p126, %p127
    %p129 = scmp.ne.s32.totalorder %s118, %s119
    %p130 = scmp.eq.s32.totalorder %s16, 0
    %p131 = por %p129, %p130
    %p132 = scmp.ne.s32.totalorder %s118, %s119
    %p133 = scmp.eq.s32.totalorder %s17, 1
    %p134 = por %p132, %p133
    %p136 = scmp.ne.s32.totalorder %s119, %s135
    %p137 = scmp.eq.s32.totalorder %s17, 0
    %p138 = por %p136, %p137
    %p139 = scmp.le.s32.totalorder 1, %s11
    %p140 = scmp.lt.s32.totalorder %s11, 3
    %p141 = pnand %p139, %p140
    %p142 = pneg %p141
    // Predicated region
    $region9: #{basic_conv_forward.2} parent=5 // pred_check
      _
    $region10: #{basic_conv_forward.2} parent=5 // pred_check_branch
      %144 = sbr.rel (%p141) target = $region12
    $region11: #{basic_conv_forward.2} parent=5 // pred_region
      %s145 = ssub.s32 %s11, 1
      // Predicated region
      $region13: #{basic_conv_forward.2} parent=11 // pred_check
        %p146 = pneg %p58
      $region14: #{basic_conv_forward.2} parent=11 // pred_check_branch
        %148 = sbr.rel (%p146) target = $region16
      $region15: #{basic_conv_forward.2} parent=11 // pred_region
        _
      $region16: #{basic_conv_forward.2} parent=11 // pred_fallthru
        _
      // Predicated region
      $region17: #{basic_conv_forward.2} parent=11 // pred_check
        %p149 = pneg %p79
      $region18: #{basic_conv_forward.2} parent=11 // pred_check_branch
        %151 = sbr.rel (%p149) target = $region20
      $region19: #{basic_conv_forward.2} parent=11 // pred_region
        _
      $region20: #{basic_conv_forward.2} parent=11 // pred_fallthru
        _
    $region12: #{basic_conv_forward.2} parent=5 // pred_fallthru
      _
    %p152 = scmp.lt.s32.totalorder %s11, 2
    // Predicated region
    $region21: #{basic_conv_forward.2} parent=5 // pred_check
      %p153 = pneg %p152
    $region22: #{basic_conv_forward.2} parent=5 // pred_check_branch
      %155 = sbr.rel (%p153) target = $region24
    $region23: #{basic_conv_forward.2} parent=5 // pred_region
      // Predicated region
      $region25: #{basic_conv_forward.2} parent=23 // pred_check
        %p156 = pneg %p31
      $region26: #{basic_conv_forward.2} parent=23 // pred_check_branch
        %158 = sbr.rel (%p156) target = $region28
      $region27: #{basic_conv_forward.2} parent=23 // pred_region
        %p159 = scmp.lt.s32.totalorder %s11, 1
        %s160 = scalar_select %p159, %s11, 1
        %s161 = smul.addr %s160, 3
        %s162 = smul.addr %s161, 2
        %s163 = scalar_lea.vmem %s0, %s162
      $region28: #{basic_conv_forward.2} parent=23 // pred_fallthru
        _
    $region24: #{basic_conv_forward.2} parent=5 // pred_fallthru
      _
    %p164 = scmp.le.s32.totalorder 1, %s11
    %p165 = scmp.lt.s32.totalorder %s11, 3
    %p166 = pnand %p164, %p165
    %p167 = pneg %p166
    // Predicated region
    $region29: #{basic_conv_forward.2} parent=5 // pred_check
      _
    $region30: #{basic_conv_forward.2} parent=5 // pred_check_branch
      %169 = sbr.rel (%p166) target = $region32
    $region31: #{basic_conv_forward.2} parent=5 // pred_region
      %s170 = ssub.s32 %s11, 1
      %p171 = scmp.lt.s32.totalorder %s16, 1
      %s172 = scalar_select %p171, %s16, 1
      %s173 = smul.addr %s172, 3
      %s174 = smul.addr %s173, 2
      %s175 = scalar_lea.vmem %s0, %s174
      %p176 = pneg %p37
      %p177 = pneg %p34
      %p178 = pneg %p58
      %p179 = pneg %p55
      %p180 = pneg %p79
      %p181 = pneg %p76
      %p182 = pneg %p105
      %p183 = pneg %p102
      %p184 = scmp.lt.s32.totalorder %s16, 1
      %s185 = scalar_select %p184, %s16, 1
      %s186 = smul.addr %s185, 3
      %s187 = smul.addr %s186, 4
      %s188 = scalar_lea.vmem %s3, %s187
      %p189 = pneg %p131
      %p190 = pneg %p128
      %p191 = scmp.lt.s32.totalorder %s16, 1
      %s192 = scalar_select %p191, %s16, 1
      %s193 = smul.addr %s192, 2
      %s194 = smul.addr %s193, 8
      %s195 = scalar_lea.vmem %s4, %s194
      %p196 = scmp.lt.s32.totalorder %s16, 1
      %s197 = scalar_select %p196, %s16, 1
      %s198 = smul.addr %s197, 3
      %s199 = smul.addr %s198, 2
      %s200 = scalar_lea.vmem %s0, %s199
      %p201 = scmp.lt.s32.totalorder %s16, 1
      %s202 = scalar_select %p201, %s16, 1
      %s203 = smul.addr %s202, 3
      %s204 = smul.addr %s203, 4
      %s205 = scalar_lea.vmem %s3, %s204
      %p206 = scmp.lt.s32.totalorder %s16, 1
      %s207 = scalar_select %p206, %s16, 1
      %s208 = smul.addr %s207, 2
      %s209 = smul.addr %s208, 8
      %s210 = scalar_lea.vmem %s4, %s209
      %v212 = vld [vmem:[%s200] sm:$0x3f]
      %v213 = vld [vmem:[%s1] sm:$0xf]
      %s214 = scalar_lea.vmem %s1, 4
      %v215 = vld [vmem:[%s214] sm:$0xf]
      %v217 = vcombine.high %v212, %v212
      %v219 = vunpack.c.l.s4 1983009808
      %v220 = vunpack.c.0.s8 %v219
      %v221 = vlaneseq
      %v222 = vshrl.u32 %v221, 7
      %v223 = vsub.s32 %v220, %v222
      %v224 = vrot.slane %v212, %v223
      %v226 = vunpack.c.l.s4 1983009808
      %v227 = vunpack.c.0.s8 %v226
      %v228 = vlaneseq
      %v229 = vshrl.u32 %v228, 7
      %v230 = vsub.s32 %v227, %v229
      %v231 = vrot.slane %v217, %v230
      %v232 = vcombine.high %v224, %v224
      %233 = vrot.lane.b32.xlu0 %v224, 127
      %v234 = vpop.permute.xlu0 %233
      %235 = vrot.lane.b32.xlu0 %v232, 127
      %v236 = vpop.permute.xlu0 %235
      %237 = vrot.lane.b32.xlu0 %v231, 127
      %v238 = vpop.permute.xlu0 %237
      %vm239 = vcmask 1039360
      %v240 = vsel %vm239, %v234, %v236
      %v241 = vsel %vm239, %v236, %v238
      %vm242 = vcmask 31744
      %v244 = vsel %vm242, %v215, 0
      %vm246 = vcmask 1041408
      %v248 = vsel %vm246, %v240, 0
      %v251 = vsel %vm246, %v241, 0
      %v254 = vsel %vm246, %v238, 0
      %256 = vmatprep.subr.bf16.mxu0 %v251
      %257 = vmatpush1.bf16.msra.mxu0 %v248
      %258 = vmatprep.subr.bf16.mxu0 0
      %259 = vmatpush1.bf16.msra.mxu0 0
      %260 = vmatprep.subr.bf16.mxu0 0
      %261 = vmatpush1.bf16.msra.mxu0 0
      %262 = vmatprep.subr.bf16.mxu0 0
      %263 = vmatpush1.bf16.msra.mxu0 0
      %264 = vmatprep.subr.bf16.mxu0 0
      %265 = vmatpush1.bf16.msra.mxu0 0
      %266 = vmatprep.subr.bf16.mxu0 0
      %267 = vmatpush1.bf16.msra.mxu0 0
      %268 = vmatprep.subr.bf16.mxu0 0
      %269 = vmatpush1.bf16.msra.mxu0 0
      %270 = vmatprep.subr.bf16.mxu0 0
      %271 = vmatpush1.bf16.msra.mxu0 0
      %272 = vmatprep.subr.bf16.mxu0 0
      %273 = vmatpush1.bf16.msra.mxu0 0
      %274 = vmatprep.subr.bf16.mxu0 0
      %275 = vmatpush1.bf16.msra.mxu0 0
      %276 = vmatprep.subr.bf16.mxu0 0
      %277 = vmatpush1.bf16.msra.mxu0 0
      %278 = vmatprep.subr.bf16.mxu0 0
      %279 = vmatpush1.bf16.msra.mxu0 0
      %280 = vmatprep.subr.bf16.mxu0 0
      %281 = vmatpush1.bf16.msra.mxu0 0
      %282 = vmatprep.subr.bf16.mxu0 0
      %283 = vmatpush1.bf16.msra.mxu0 0
      %284 = vmatprep.subr.bf16.mxu0 0
      %285 = vmatpush1.bf16.msra.mxu0 0
      %286 = vmatprep.subr.bf16.mxu0 0
      %287 = vmatpush1.bf16.msra.mxu0 0
      %288 = vmatprep.mubr.bf16.mxu0 0
      %289 = vmatmul.mubr.bf16.gmra.mrb[0].mxu0 %v244
      %v290 = vpop.f32.mrb[0].mxu0
      %v291 = vadd.f32 0.0, %v290
      %v292 = vpop.f32.mrb[0].mxu0
      %v293 = vadd.f32 0.0, %v292
      %v294 = vpop.f32.mrb[0].mxu0
      %v295 = vpop.f32.mrb[0].mxu0
      %296 = vdwg.mxu0
      %297 = vmatprep.subr.bf16.mxu0 0
      %298 = vmatpush1.bf16.msra.mxu0 %v254
      %299 = vmatprep.subr.bf16.mxu0 0
      %300 = vmatpush1.bf16.msra.mxu0 0
      %301 = vmatprep.subr.bf16.mxu0 0
      %302 = vmatpush1.bf16.msra.mxu0 0
      %303 = vmatprep.subr.bf16.mxu0 0
      %304 = vmatpush1.bf16.msra.mxu0 0
      %305 = vmatprep.subr.bf16.mxu0 0
      %306 = vmatpush1.bf16.msra.mxu0 0
      %307 = vmatprep.subr.bf16.mxu0 0
      %308 = vmatpush1.bf16.msra.mxu0 0
      %309 = vmatprep.subr.bf16.mxu0 0
      %310 = vmatpush1.bf16.msra.mxu0 0
      %311 = vmatprep.subr.bf16.mxu0 0
      %312 = vmatpush1.bf16.msra.mxu0 0
      %313 = vmatprep.subr.bf16.mxu0 0
      %314 = vmatpush1.bf16.msra.mxu0 0
      %315 = vmatprep.subr.bf16.mxu0 0
      %316 = vmatpush1.bf16.msra.mxu0 0
      %317 = vmatprep.subr.bf16.mxu0 0
      %318 = vmatpush1.bf16.msra.mxu0 0
      %319 = vmatprep.subr.bf16.mxu0 0
      %320 = vmatpush1.bf16.msra.mxu0 0
      %321 = vmatprep.subr.bf16.mxu0 0
      %322 = vmatpush1.bf16.msra.mxu0 0
      %323 = vmatprep.subr.bf16.mxu0 0
      %324 = vmatpush1.bf16.msra.mxu0 0
      %325 = vmatprep.subr.bf16.mxu0 0
      %326 = vmatpush1.bf16.msra.mxu0 0
      %327 = vmatprep.subr.bf16.mxu0 0
      %328 = vmatpush1.bf16.msra.mxu0 0
      %329 = vmatprep.mubr.bf16.mxu0 0
      %330 = vmatmul.mubr.bf16.gmra.mrb[0].mxu0 %v244
      %v331 = vpop.f32.mrb[0].mxu0
      %v332 = vadd.f32 0.0, %v331
      %v333 = vpop.f32.mrb[0].mxu0
      %v334 = vpop.f32.mrb[0].mxu0
      %v335 = vpop.f32.mrb[0].mxu0
      %336 = vdwg.mxu0
      %v338 = vsel %vm242, %v213, 0
      %v341 = vsel %vm246, %v224, 0
      %v344 = vsel %vm246, %v232, 0
      %v347 = vsel %vm246, %v231, 0
      %349 = vmatprep.subr.bf16.mxu0 %v344
      %350 = vmatpush1.bf16.msra.mxu0 %v341
      %351 = vmatprep.subr.bf16.mxu0 0
      %352 = vmatpush1.bf16.msra.mxu0 0
      %353 = vmatprep.subr.bf16.mxu0 0
      %354 = vmatpush1.bf16.msra.mxu0 0
      %355 = vmatprep.subr.bf16.mxu0 0
      %356 = vmatpush1.bf16.msra.mxu0 0
      %357 = vmatprep.subr.bf16.mxu0 0
      %358 = vmatpush1.bf16.msra.mxu0 0
      %359 = vmatprep.subr.bf16.mxu0 0
      %360 = vmatpush1.bf16.msra.mxu0 0
      %361 = vmatprep.subr.bf16.mxu0 0
      %362 = vmatpush1.bf16.msra.mxu0 0
      %363 = vmatprep.subr.bf16.mxu0 0
      %364 = vmatpush1.bf16.msra.mxu0 0
      %365 = vmatprep.subr.bf16.mxu0 0
      %366 = vmatpush1.bf16.msra.mxu0 0
      %367 = vmatprep.subr.bf16.mxu0 0
      %368 = vmatpush1.bf16.msra.mxu0 0
      %369 = vmatprep.subr.bf16.mxu0 0
      %370 = vmatpush1.bf16.msra.mxu0 0
      %371 = vmatprep.subr.bf16.mxu0 0
      %372 = vmatpush1.bf16.msra.mxu0 0
      %373 = vmatprep.subr.bf16.mxu0 0
      %374 = vmatpush1.bf16.msra.mxu0 0
      %375 = vmatprep.subr.bf16.mxu0 0
      %376 = vmatpush1.bf16.msra.mxu0 0
      %377 = vmatprep.subr.bf16.mxu0 0
      %378 = vmatpush1.bf16.msra.mxu0 0
      %379 = vmatprep.subr.bf16.mxu0 0
      %380 = vmatpush1.bf16.msra.mxu0 0
      %381 = vmatprep.mubr.bf16.mxu0 0
      %382 = vmatmul.mubr.bf16.gmra.mrb[0].mxu0 %v338
      %v383 = vpop.f32.mrb[0].mxu0
      %v384 = vadd.f32 %v291, %v383
      %v385 = vpop.f32.mrb[0].mxu0
      %v386 = vadd.f32 %v293, %v385
      %v387 = vpop.f32.mrb[0].mxu0
      %v388 = vpop.f32.mrb[0].mxu0
      %389 = vdwg.mxu0
      %390 = vmatprep.subr.bf16.mxu0 0
      %391 = vmatpush1.bf16.msra.mxu0 %v347
      %392 = vmatprep.subr.bf16.mxu0 0
      %393 = vmatpush1.bf16.msra.mxu0 0
      %394 = vmatprep.subr.bf16.mxu0 0
      %395 = vmatpush1.bf16.msra.mxu0 0
      %396 = vmatprep.subr.bf16.mxu0 0
      %397 = vmatpush1.bf16.msra.mxu0 0
      %398 = vmatprep.subr.bf16.mxu0 0
      %399 = vmatpush1.bf16.msra.mxu0 0
      %400 = vmatprep.subr.bf16.mxu0 0
      %401 = vmatpush1.bf16.msra.mxu0 0
      %402 = vmatprep.subr.bf16.mxu0 0
      %403 = vmatpush1.bf16.msra.mxu0 0
      %404 = vmatprep.subr.bf16.mxu0 0
      %405 = vmatpush1.bf16.msra.mxu0 0
      %406 = vmatprep.subr.bf16.mxu0 0
      %407 = vmatpush1.bf16.msra.mxu0 0
      %408 = vmatprep.subr.bf16.mxu0 0
      %409 = vmatpush1.bf16.msra.mxu0 0
      %410 = vmatprep.subr.bf16.mxu0 0
      %411 = vmatpush1.bf16.msra.mxu0 0
      %412 = vmatprep.subr.bf16.mxu0 0
      %413 = vmatpush1.bf16.msra.mxu0 0
      %414 = vmatprep.subr.bf16.mxu0 0
      %415 = vmatpush1.bf16.msra.mxu0 0
      %416 = vmatprep.subr.bf16.mxu0 0
      %417 = vmatpush1.bf16.msra.mxu0 0
      %418 = vmatprep.subr.bf16.mxu0 0
      %419 = vmatpush1.bf16.msra.mxu0 0
      %420 = vmatprep.subr.bf16.mxu0 0
      %421 = vmatpush1.bf16.msra.mxu0 0
      %422 = vmatprep.mubr.bf16.mxu0 0
      %423 = vmatmul.mubr.bf16.gmra.mrb[0].mxu0 %v338
      %v424 = vpop.f32.mrb[0].mxu0
      %v425 = vadd.f32 %v332, %v424
      %v426 = vpop.f32.mrb[0].mxu0
      %v427 = vpop.f32.mrb[0].mxu0
      %v428 = vpop.f32.mrb[0].mxu0
      %429 = vdwg.mxu0
      %v430 = vld [vmem:[%s200] sm:$0x3f]
      %s431 = scalar_lea.vmem %s1, 8
      %v432 = vld [vmem:[%s431] sm:$0xf]
      %v434 = vcombine.high %v430, %v430
      %v436 = vunpack.c.l.s4 1983009808
      %v437 = vunpack.c.0.s8 %v436
      %v438 = vlaneseq
      %v439 = vshrl.u32 %v438, 7
      %v440 = vsub.s32 %v437, %v439
      %v441 = vrot.slane %v430, %v440
      %v443 = vunpack.c.l.s4 1983009808
      %v444 = vunpack.c.0.s8 %v443
      %v445 = vlaneseq
      %v446 = vshrl.u32 %v445, 7
      %v447 = vsub.s32 %v444, %v446
      %v448 = vrot.slane %v434, %v447
      %v449 = vcombine.high %v441, %v441
      %450 = vrot.lane.b32.xlu0 %v441, 126
      %v451 = vpop.permute.xlu0 %450
      %452 = vrot.lane.b32.xlu0 %v449, 126
      %v453 = vpop.permute.xlu0 %452
      %454 = vrot.lane.b32.xlu0 %v448, 126
      %v455 = vpop.permute.xlu0 %454
      %vm456 = vcmask 1031168
      %v457 = vsel %vm456, %v451, %v453
      %v458 = vsel %vm456, %v453, %v455
      %v460 = vsel %vm242, %v432, 0
      %v463 = vsel %vm246, %v457, 0
      %v466 = vsel %vm246, %v458, 0
      %v469 = vsel %vm246, %v455, 0
      %471 = vmatprep.subr.bf16.mxu0 %v466
      %472 = vmatpush1.bf16.msra.mxu0 %v463
      %473 = vmatprep.subr.bf16.mxu0 0
      %474 = vmatpush1.bf16.msra.mxu0 0
      %475 = vmatprep.subr.bf16.mxu0 0
      %476 = vmatpush1.bf16.msra.mxu0 0
      %477 = vmatprep.subr.bf16.mxu0 0
      %478 = vmatpush1.bf16.msra.mxu0 0
      %479 = vmatprep.subr.bf16.mxu0 0
      %480 = vmatpush1.bf16.msra.mxu0 0
      %481 = vmatprep.subr.bf16.mxu0 0
      %482 = vmatpush1.bf16.msra.mxu0 0
      %483 = vmatprep.subr.bf16.mxu0 0
      %484 = vmatpush1.bf16.msra.mxu0 0
      %485 = vmatprep.subr.bf16.mxu0 0
      %486 = vmatpush1.bf16.msra.mxu0 0
      %487 = vmatprep.subr.bf16.mxu0 0
      %488 = vmatpush1.bf16.msra.mxu0 0
      %489 = vmatprep.subr.bf16.mxu0 0
      %490 = vmatpush1.bf16.msra.mxu0 0
      %491 = vmatprep.subr.bf16.mxu0 0
      %492 = vmatpush1.bf16.msra.mxu0 0
      %493 = vmatprep.subr.bf16.mxu0 0
      %494 = vmatpush1.bf16.msra.mxu0 0
      %495 = vmatprep.subr.bf16.mxu0 0
      %496 = vmatpush1.bf16.msra.mxu0 0
      %497 = vmatprep.subr.bf16.mxu0 0
      %498 = vmatpush1.bf16.msra.mxu0 0
      %499 = vmatprep.subr.bf16.mxu0 0
      %500 = vmatpush1.bf16.msra.mxu0 0
      %501 = vmatprep.subr.bf16.mxu0 0
      %502 = vmatpush1.bf16.msra.mxu0 0
      %503 = vmatprep.mubr.bf16.mxu0 0
      %504 = vmatmul.mubr.bf16.gmra.mrb[0].mxu0 %v460
      %v505 = vpop.f32.mrb[0].mxu0
      %v506 = vadd.f32 0.0, %v505
      %v507 = vpop.f32.mrb[0].mxu0
      %v508 = vadd.f32 0.0, %v507
      %v509 = vpop.f32.mrb[0].mxu0
      %v510 = vpop.f32.mrb[0].mxu0
      %511 = vdwg.mxu0
      %512 = vmatprep.subr.bf16.mxu0 0
      %513 = vmatpush1.bf16.msra.mxu0 %v469
      %514 = vmatprep.subr.bf16.mxu0 0
      %515 = vmatpush1.bf16.msra.mxu0 0
      %516 = vmatprep.subr.bf16.mxu0 0
      %517 = vmatpush1.bf16.msra.mxu0 0
      %518 = vmatprep.subr.bf16.mxu0 0
      %519 = vmatpush1.bf16.msra.mxu0 0
      %520 = vmatprep.subr.bf16.mxu0 0
      %521 = vmatpush1.bf16.msra.mxu0 0
      %522 = vmatprep.subr.bf16.mxu0 0
      %523 = vmatpush1.bf16.msra.mxu0 0
      %524 = vmatprep.subr.bf16.mxu0 0
      %525 = vmatpush1.bf16.msra.mxu0 0
      %526 = vmatprep.subr.bf16.mxu0 0
      %527 = vmatpush1.bf16.msra.mxu0 0
      %528 = vmatprep.subr.bf16.mxu0 0
      %529 = vmatpush1.bf16.msra.mxu0 0
      %530 = vmatprep.subr.bf16.mxu0 0
      %531 = vmatpush1.bf16.msra.mxu0 0
      %532 = vmatprep.subr.bf16.mxu0 0
      %533 = vmatpush1.bf16.msra.mxu0 0
      %534 = vmatprep.subr.bf16.mxu0 0
      %535 = vmatpush1.bf16.msra.mxu0 0
      %536 = vmatprep.subr.bf16.mxu0 0
      %537 = vmatpush1.bf16.msra.mxu0 0
      %538 = vmatprep.subr.bf16.mxu0 0
      %539 = vmatpush1.bf16.msra.mxu0 0
      %540 = vmatprep.subr.bf16.mxu0 0
      %541 = vmatpush1.bf16.msra.mxu0 0
      %542 = vmatprep.subr.bf16.mxu0 0
      %543 = vmatpush1.bf16.msra.mxu0 0
      %544 = vmatprep.mubr.bf16.mxu0 0
      %545 = vmatmul.mubr.bf16.gmra.mrb[0].mxu0 %v460
      %v546 = vpop.f32.mrb[0].mxu0
      %v547 = vadd.f32 0.0, %v546
      %v548 = vpop.f32.mrb[0].mxu0
      %v549 = vpop.f32.mrb[0].mxu0
      %v550 = vpop.f32.mrb[0].mxu0
      %551 = vdwg.mxu0
      %v552 = vadd.f32 %v384, %v506
      %v553 = vadd.f32 %v386, %v508
      %v554 = vadd.f32 %v425, %v547
      %v555 = vld [vmem:[%s200] sm:$0x3f]
      %s556 = scalar_lea.vmem %s1, 12
      %v557 = vld [vmem:[%s556] sm:$0xf]
      %v559 = vcombine.high %v555, %v555
      %v561 = vunpack.c.l.s4 1983009808
      %v562 = vunpack.c.0.s8 %v561
      %v563 = vlaneseq
      %v564 = vshrl.u32 %v563, 7
      %v565 = vsub.s32 %v562, %v564
      %v566 = vrot.slane %v555, %v565
      %v568 = vunpack.c.l.s4 1983009808
      %v569 = vunpack.c.0.s8 %v568
      %v570 = vlaneseq
      %v571 = vshrl.u32 %v570, 7
      %v572 = vsub.s32 %v569, %v571
      %v573 = vrot.slane %v559, %v572
      %v574 = vcombine.high %v566, %v566
      %575 = vrot.lane.b32.xlu0 %v566, 110
      %v576 = vpop.permute.xlu0 %575
      %577 = vrot.lane.b32.xlu0 %v574, 110
      %v578 = vpop.permute.xlu0 %577
      %579 = vrot.lane.b32.xlu0 %v573, 110
      %v580 = vpop.permute.xlu0 %579
      %vm581 = vcmask 900096
      %v582 = vsel %vm581, %v576, %v578
      %v583 = vsel %vm581, %v578, %v580
      %v585 = vsel %vm242, %v557, 0
      %v588 = vsel %vm246, %v582, 0
      %v591 = vsel %vm246, %v583, 0
      %v594 = vsel %vm246, %v580, 0
      %596 = vmatprep.subr.bf16.mxu0 %v591
      %597 = vmatpush1.bf16.msra.mxu0 %v588
      %598 = vmatprep.subr.bf16.mxu0 0
      %599 = vmatpush1.bf16.msra.mxu0 0
      %600 = vmatprep.subr.bf16.mxu0 0
      %601 = vmatpush1.bf16.msra.mxu0 0
      %602 = vmatprep.subr.bf16.mxu0 0
      %603 = vmatpush1.bf16.msra.mxu0 0
      %604 = vmatprep.subr.bf16.mxu0 0
      %605 = vmatpush1.bf16.msra.mxu0 0
      %606 = vmatprep.subr.bf16.mxu0 0
      %607 = vmatpush1.bf16.msra.mxu0 0
      %608 = vmatprep.subr.bf16.mxu0 0
      %609 = vmatpush1.bf16.msra.mxu0 0
      %610 = vmatprep.subr.bf16.mxu0 0
      %611 = vmatpush1.bf16.msra.mxu0 0
      %612 = vmatprep.subr.bf16.mxu0 0
      %613 = vmatpush1.bf16.msra.mxu0 0
      %614 = vmatprep.subr.bf16.mxu0 0
      %615 = vmatpush1.bf16.msra.mxu0 0
      %616 = vmatprep.subr.bf16.mxu0 0
      %617 = vmatpush1.bf16.msra.mxu0 0
      %618 = vmatprep.subr.bf16.mxu0 0
      %619 = vmatpush1.bf16.msra.mxu0 0
      %620 = vmatprep.subr.bf16.mxu0 0
      %621 = vmatpush1.bf16.msra.mxu0 0
      %622 = vmatprep.subr.bf16.mxu0 0
      %623 = vmatpush1.bf16.msra.mxu0 0
      %624 = vmatprep.subr.bf16.mxu0 0
      %625 = vmatpush1.bf16.msra.mxu0 0
      %626 = vmatprep.subr.bf16.mxu0 0
      %627 = vmatpush1.bf16.msra.mxu0 0
      %628 = vmatprep.mubr.bf16.mxu0 0
      %629 = vmatmul.mubr.bf16.gmra.mrb[0].mxu0 %v585
      %v630 = vpop.f32.mrb[0].mxu0
      %v631 = vadd.f32 0.0, %v630
      %v632 = vpop.f32.mrb[0].mxu0
      %v633 = vadd.f32 0.0, %v632
      %v634 = vpop.f32.mrb[0].mxu0
      %v635 = vpop.f32.mrb[0].mxu0
      %636 = vdwg.mxu0
      %637 = vmatprep.subr.bf16.mxu0 0
      %638 = vmatpush1.bf16.msra.mxu0 %v594
      %639 = vmatprep.subr.bf16.mxu0 0
      %640 = vmatpush1.bf16.msra.mxu0 0
      %641 = vmatprep.subr.bf16.mxu0 0
      %642 = vmatpush1.bf16.msra.mxu0 0
      %643 = vmatprep.subr.bf16.mxu0 0
      %644 = vmatpush1.bf16.msra.mxu0 0
      %645 = vmatprep.subr.bf16.mxu0 0
      %646 = vmatpush1.bf16.msra.mxu0 0
      %647 = vmatprep.subr.bf16.mxu0 0
      %648 = vmatpush1.bf16.msra.mxu0 0
      %649 = vmatprep.subr.bf16.mxu0 0
      %650 = vmatpush1.bf16.msra.mxu0 0
      %651 = vmatprep.subr.bf16.mxu0 0
      %652 = vmatpush1.bf16.msra.mxu0 0
      %653 = vmatprep.subr.bf16.mxu0 0
      %654 = vmatpush1.bf16.msra.mxu0 0
      %655 = vmatprep.subr.bf16.mxu0 0
      %656 = vmatpush1.bf16.msra.mxu0 0
      %657 = vmatprep.subr.bf16.mxu0 0
      %658 = vmatpush1.bf16.msra.mxu0 0
      %659 = vmatprep.subr.bf16.mxu0 0
      %660 = vmatpush1.bf16.msra.mxu0 0
      %661 = vmatprep.subr.bf16.mxu0 0
      %662 = vmatpush1.bf16.msra.mxu0 0
      %663 = vmatprep.subr.bf16.mxu0 0
      %664 = vmatpush1.bf16.msra.mxu0 0
      %665 = vmatprep.subr.bf16.mxu0 0
      %666 = vmatpush1.bf16.msra.mxu0 0
      %667 = vmatprep.subr.bf16.mxu0 0
      %668 = vmatpush1.bf16.msra.mxu0 0
      %669 = vmatprep.mubr.bf16.mxu0 0
      %670 = vmatmul.mubr.bf16.gmra.mrb[0].mxu0 %v585
      %v671 = vpop.f32.mrb[0].mxu0
      %v672 = vadd.f32 0.0, %v671
      %v673 = vpop.f32.mrb[0].mxu0
      %v674 = vpop.f32.mrb[0].mxu0
      %v675 = vpop.f32.mrb[0].mxu0
      %676 = vdwg.mxu0
      %v677 = vadd.f32 %v552, %v631
      %v678 = vadd.f32 %v553, %v633
      %v679 = vadd.f32 %v554, %v672
      %v680 = vld [vmem:[%s200] sm:$0x3f]
      %s681 = scalar_lea.vmem %s1, 16
      %v682 = vld [vmem:[%s681] sm:$0xf]
      %v684 = vcombine.high %v680, %v680
      %v686 = vunpack.c.l.s4 1983009808
      %v687 = vunpack.c.0.s8 %v686
      %v688 = vlaneseq
      %v689 = vshrl.u32 %v688, 7
      %v690 = vsub.s32 %v687, %v689
      %v691 = vrot.slane %v680, %v690
      %v693 = vunpack.c.l.s4 1983009808
      %v694 = vunpack.c.0.s8 %v693
      %v695 = vlaneseq
      %v696 = vshrl.u32 %v695, 7
      %v697 = vsub.s32 %v694, %v696
      %v698 = vrot.slane %v684, %v697
      %v699 = vcombine.high %v691, %v691
      %700 = vrot.lane.b32.xlu0 %v691, 109
      %v701 = vpop.permute.xlu0 %700
      %702 = vrot.lane.b32.xlu0 %v699, 109
      %v703 = vpop.permute.xlu0 %702
      %704 = vrot.lane.b32.xlu0 %v698, 109
      %v705 = vpop.permute.xlu0 %704
      %vm706 = vcmask 891904
      %v707 = vsel %vm706, %v701, %v703
      %v708 = vsel %vm706, %v703, %v705
      %v710 = vsel %vm242, %v682, 0
      %v713 = vsel %vm246, %v707, 0
      %v716 = vsel %vm246, %v708, 0
      %v719 = vsel %vm246, %v705, 0
      %721 = vmatprep.subr.bf16.mxu0 %v716
      %722 = vmatpush1.bf16.msra.mxu0 %v713
      %723 = vmatprep.subr.bf16.mxu0 0
      %724 = vmatpush1.bf16.msra.mxu0 0
      %725 = vmatprep.subr.bf16.mxu0 0
      %726 = vmatpush1.bf16.msra.mxu0 0
      %727 = vmatprep.subr.bf16.mxu0 0
      %728 = vmatpush1.bf16.msra.mxu0 0
      %729 = vmatprep.subr.bf16.mxu0 0
      %730 = vmatpush1.bf16.msra.mxu0 0
      %731 = vmatprep.subr.bf16.mxu0 0
      %732 = vmatpush1.bf16.msra.mxu0 0
      %733 = vmatprep.subr.bf16.mxu0 0
      %734 = vmatpush1.bf16.msra.mxu0 0
      %735 = vmatprep.subr.bf16.mxu0 0
      %736 = vmatpush1.bf16.msra.mxu0 0
      %737 = vmatprep.subr.bf16.mxu0 0
      %738 = vmatpush1.bf16.msra.mxu0 0
      %739 = vmatprep.subr.bf16.mxu0 0
      %740 = vmatpush1.bf16.msra.mxu0 0
      %741 = vmatprep.subr.bf16.mxu0 0
      %742 = vmatpush1.bf16.msra.mxu0 0
      %743 = vmatprep.subr.bf16.mxu0 0
      %744 = vmatpush1.bf16.msra.mxu0 0
      %745 = vmatprep.subr.bf16.mxu0 0
      %746 = vmatpush1.bf16.msra.mxu0 0
      %747 = vmatprep.subr.bf16.mxu0 0
      %748 = vmatpush1.bf16.msra.mxu0 0
      %749 = vmatprep.subr.bf16.mxu0 0
      %750 = vmatpush1.bf16.msra.mxu0 0
      %751 = vmatprep.subr.bf16.mxu0 0
      %752 = vmatpush1.bf16.msra.mxu0 0
      %753 = vmatprep.mubr.bf16.mxu0 0
      %754 = vmatmul.mubr.bf16.gmra.mrb[0].mxu0 %v710
      %v755 = vpop.f32.mrb[0].mxu0
      %v756 = vadd.f32 0.0, %v755
      %v757 = vpop.f32.mrb[0].mxu0
      %v758 = vadd.f32 0.0, %v757
      %v759 = vpop.f32.mrb[0].mxu0
      %v760 = vpop.f32.mrb[0].mxu0
      %761 = vdwg.mxu0
      %762 = vmatprep.subr.bf16.mxu0 0
      %763 = vmatpush1.bf16.msra.mxu0 %v719
      %764 = vmatprep.subr.bf16.mxu0 0
      %765 = vmatpush1.bf16.msra.mxu0 0
      %766 = vmatprep.subr.bf16.mxu0 0
      %767 = vmatpush1.bf16.msra.mxu0 0
      %768 = vmatprep.subr.bf16.mxu0 0
      %769 = vmatpush1.bf16.msra.mxu0 0
      %770 = vmatprep.subr.bf16.mxu0 0
      %771 = vmatpush1.bf16.msra.mxu0 0
      %772 = vmatprep.subr.bf16.mxu0 0
      %773 = vmatpush1.bf16.msra.mxu0 0
      %774 = vmatprep.subr.bf16.mxu0 0
      %775 = vmatpush1.bf16.msra.mxu0 0
      %776 = vmatprep.subr.bf16.mxu0 0
      %777 = vmatpush1.bf16.msra.mxu0 0
      %778 = vmatprep.subr.bf16.mxu0 0
      %779 = vmatpush1.bf16.msra.mxu0 0
      %780 = vmatprep.subr.bf16.mxu0 0
      %781 = vmatpush1.bf16.msra.mxu0 0
      %782 = vmatprep.subr.bf16.mxu0 0
      %783 = vmatpush1.bf16.msra.mxu0 0
      %784 = vmatprep.subr.bf16.mxu0 0
      %785 = vmatpush1.bf16.msra.mxu0 0
      %786 = vmatprep.subr.bf16.mxu0 0
      %787 = vmatpush1.bf16.msra.mxu0 0
      %788 = vmatprep.subr.bf16.mxu0 0
      %789 = vmatpush1.bf16.msra.mxu0 0
      %790 = vmatprep.subr.bf16.mxu0 0
      %791 = vmatpush1.bf16.msra.mxu0 0
      %792 = vmatprep.subr.bf16.mxu0 0
      %793 = vmatpush1.bf16.msra.mxu0 0
      %794 = vmatprep.mubr.bf16.mxu0 0
      %795 = vmatmul.mubr.bf16.gmra.mrb[0].mxu0 %v710
      %v796 = vpop.f32.mrb[0].mxu0
      %v797 = vadd.f32 0.0, %v796
      %v798 = vpop.f32.mrb[0].mxu0
      %v799 = vpop.f32.mrb[0].mxu0
      %v800 = vpop.f32.mrb[0].mxu0
      %801 = vdwg.mxu0
      %v802 = vadd.f32 %v677, %v756
      %v803 = vadd.f32 %v678, %v758
      %v804 = vadd.f32 %v679, %v797
      %v805 = vld [vmem:[%s200] sm:$0x3f]
      %s806 = scalar_lea.vmem %s1, 20
      %v807 = vld [vmem:[%s806] sm:$0xf]
      %v809 = vcombine.high %v805, %v805
      %v811 = vunpack.c.l.s4 1983009808
      %v812 = vunpack.c.0.s8 %v811
      %v813 = vlaneseq
      %v814 = vshrl.u32 %v813, 7
      %v815 = vsub.s32 %v812, %v814
      %v816 = vrot.slane %v805, %v815
      %v818 = vunpack.c.l.s4 1983009808
      %v819 = vunpack.c.0.s8 %v818
      %v820 = vlaneseq
      %v821 = vshrl.u32 %v820, 7
      %v822 = vsub.s32 %v819, %v821
      %v823 = vrot.slane %v809, %v822
      %v824 = vcombine.high %v816, %v816
      %825 = vrot.lane.b32.xlu0 %v816, 108
      %v826 = vpop.permute.xlu0 %825
      %827 = vrot.lane.b32.xlu0 %v824, 108
      %v828 = vpop.permute.xlu0 %827
      %829 = vrot.lane.b32.xlu0 %v823, 108
      %v830 = vpop.permute.xlu0 %829
      %vm831 = vcmask 883712
      %v832 = vsel %vm831, %v826, %v828
      %v833 = vsel %vm831, %v828, %v830
      %v835 = vsel %vm242, %v807, 0
      %v838 = vsel %vm246, %v832, 0
      %v841 = vsel %vm246, %v833, 0
      %v844 = vsel %vm246, %v830, 0
      %846 = vmatprep.subr.bf16.mxu0 %v841
      %847 = vmatpush1.bf16.msra.mxu0 %v838
      %848 = vmatprep.subr.bf16.mxu0 0
      %849 = vmatpush1.bf16.msra.mxu0 0
      %850 = vmatprep.subr.bf16.mxu0 0
      %851 = vmatpush1.bf16.msra.mxu0 0
      %852 = vmatprep.subr.bf16.mxu0 0
      %853 = vmatpush1.bf16.msra.mxu0 0
      %854 = vmatprep.subr.bf16.mxu0 0
      %855 = vmatpush1.bf16.msra.mxu0 0
      %856 = vmatprep.subr.bf16.mxu0 0
      %857 = vmatpush1.bf16.msra.mxu0 0
      %858 = vmatprep.subr.bf16.mxu0 0
      %859 = vmatpush1.bf16.msra.mxu0 0
      %860 = vmatprep.subr.bf16.mxu0 0
      %861 = vmatpush1.bf16.msra.mxu0 0
      %862 = vmatprep.subr.bf16.mxu0 0
      %863 = vmatpush1.bf16.msra.mxu0 0
      %864 = vmatprep.subr.bf16.mxu0 0
      %865 = vmatpush1.bf16.msra.mxu0 0
      %866 = vmatprep.subr.bf16.mxu0 0
      %867 = vmatpush1.bf16.msra.mxu0 0
      %868 = vmatprep.subr.bf16.mxu0 0
      %869 = vmatpush1.bf16.msra.mxu0 0
      %870 = vmatprep.subr.bf16.mxu0 0
      %871 = vmatpush1.bf16.msra.mxu0 0
      %872 = vmatprep.subr.bf16.mxu0 0
      %873 = vmatpush1.bf16.msra.mxu0 0
      %874 = vmatprep.subr.bf16.mxu0 0
      %875 = vmatpush1.bf16.msra.mxu0 0
      %876 = vmatprep.subr.bf16.mxu0 0
      %877 = vmatpush1.bf16.msra.mxu0 0
      %878 = vmatprep.mubr.bf16.mxu0 0
      %879 = vmatmul.mubr.bf16.gmra.mrb[0].mxu0 %v835
      %v880 = vpop.f32.mrb[0].mxu0
      %v881 = vadd.f32 0.0, %v880
      %v882 = vpop.f32.mrb[0].mxu0
      %v883 = vadd.f32 0.0, %v882
      %v884 = vpop.f32.mrb[0].mxu0
      %v885 = vpop.f32.mrb[0].mxu0
      %886 = vdwg.mxu0
      %887 = vmatprep.subr.bf16.mxu0 0
      %888 = vmatpush1.bf16.msra.mxu0 %v844
      %889 = vmatprep.subr.bf16.mxu0 0
      %890 = vmatpush1.bf16.msra.mxu0 0
      %891 = vmatprep.subr.bf16.mxu0 0
      %892 = vmatpush1.bf16.msra.mxu0 0
      %893 = vmatprep.subr.bf16.mxu0 0
      %894 = vmatpush1.bf16.msra.mxu0 0
      %895 = vmatprep.subr.bf16.mxu0 0
      %896 = vmatpush1.bf16.msra.mxu0 0
      %897 = vmatprep.subr.bf16.mxu0 0
      %898 = vmatpush1.bf16.msra.mxu0 0
      %899 = vmatprep.subr.bf16.mxu0 0
      %900 = vmatpush1.bf16.msra.mxu0 0
      %901 = vmatprep.subr.bf16.mxu0 0
      %902 = vmatpush1.bf16.msra.mxu0 0
      %903 = vmatprep.subr.bf16.mxu0 0
      %904 = vmatpush1.bf16.msra.mxu0 0
      %905 = vmatprep.subr.bf16.mxu0 0
      %906 = vmatpush1.bf16.msra.mxu0 0
      %907 = vmatprep.subr.bf16.mxu0 0
      %908 = vmatpush1.bf16.msra.mxu0 0
      %909 = vmatprep.subr.bf16.mxu0 0
      %910 = vmatpush1.bf16.msra.mxu0 0
      %911 = vmatprep.subr.bf16.mxu0 0
      %912 = vmatpush1.bf16.msra.mxu0 0
      %913 = vmatprep.subr.bf16.mxu0 0
      %914 = vmatpush1.bf16.msra.mxu0 0
      %915 = vmatprep.subr.bf16.mxu0 0
      %916 = vmatpush1.bf16.msra.mxu0 0
      %917 = vmatprep.subr.bf16.mxu0 0
      %918 = vmatpush1.bf16.msra.mxu0 0
      %919 = vmatprep.mubr.bf16.mxu0 0
      %920 = vmatmul.mubr.bf16.gmra.mrb[0].mxu0 %v835
      %v921 = vpop.f32.mrb[0].mxu0
      %v922 = vadd.f32 0.0, %v921
      %v923 = vpop.f32.mrb[0].mxu0
      %v924 = vpop.f32.mrb[0].mxu0
      %v925 = vpop.f32.mrb[0].mxu0
      %926 = vdwg.mxu0
      %v927 = vadd.f32 %v802, %v881
      %v928 = vadd.f32 %v803, %v883
      %v929 = vadd.f32 %v804, %v922
      %v930 = vld [vmem:[%s200] sm:$0x3f]
      %s931 = scalar_lea.vmem %s1, 24
      %v932 = vld [vmem:[%s931] sm:$0xf]
      %v934 = vcombine.high %v930, %v930
      %v936 = vunpack.c.l.s4 1983009808
      %v937 = vunpack.c.0.s8 %v936
      %v938 = vlaneseq
      %v939 = vshrl.u32 %v938, 7
      %v940 = vsub.s32 %v937, %v939
      %v941 = vrot.slane %v930, %v940
      %v943 = vunpack.c.l.s4 1983009808
      %v944 = vunpack.c.0.s8 %v943
      %v945 = vlaneseq
      %v946 = vshrl.u32 %v945, 7
      %v947 = vsub.s32 %v944, %v946
      %v948 = vrot.slane %v934, %v947
      %v949 = vcombine.high %v941, %v941
      %950 = vrot.lane.b32.xlu0 %v941, 92
      %v951 = vpop.permute.xlu0 %950
      %952 = vrot.lane.b32.xlu0 %v949, 92
      %v953 = vpop.permute.xlu0 %952
      %954 = vrot.lane.b32.xlu0 %v948, 92
      %v955 = vpop.permute.xlu0 %954
      %vm956 = vcmask 752640
      %v957 = vsel %vm956, %v951, %v953
      %v958 = vsel %vm956, %v953, %v955
      %v960 = vsel %vm242, %v932, 0
      %v963 = vsel %vm246, %v957, 0
      %v966 = vsel %vm246, %v958, 0
      %v969 = vsel %vm246, %v955, 0
      %971 = vmatprep.subr.bf16.mxu0 %v966
      %972 = vmatpush1.bf16.msra.mxu0 %v963
      %973 = vmatprep.subr.bf16.mxu0 0
      %974 = vmatpush1.bf16.msra.mxu0 0
      %975 = vmatprep.subr.bf16.mxu0 0
      %976 = vmatpush1.bf16.msra.mxu0 0
      %977 = vmatprep.subr.bf16.mxu0 0
      %978 = vmatpush1.bf16.msra.mxu0 0
      %979 = vmatprep.subr.bf16.mxu0 0
      %980 = vmatpush1.bf16.msra.mxu0 0
      %981 = vmatprep.subr.bf16.mxu0 0
      %982 = vmatpush1.bf16.msra.mxu0 0
      %983 = vmatprep.subr.bf16.mxu0 0
      %984 = vmatpush1.bf16.msra.mxu0 0
      %985 = vmatprep.subr.bf16.mxu0 0
      %986 = vmatpush1.bf16.msra.mxu0 0
      %987 = vmatprep.subr.bf16.mxu0 0
      %988 = vmatpush1.bf16.msra.mxu0 0
      %989 = vmatprep.subr.bf16.mxu0 0
      %990 = vmatpush1.bf16.msra.mxu0 0
      %991 = vmatprep.subr.bf16.mxu0 0
      %992 = vmatpush1.bf16.msra.mxu0 0
      %993 = vmatprep.subr.bf16.mxu0 0
      %994 = vmatpush1.bf16.msra.mxu0 0
      %995 = vmatprep.subr.bf16.mxu0 0
      %996 = vmatpush1.bf16.msra.mxu0 0
      %997 = vmatprep.subr.bf16.mxu0 0
      %998 = vmatpush1.bf16.msra.mxu0 0
      %999 = vmatprep.subr.bf16.mxu0 0
      %1000 = vmatpush1.bf16.msra.mxu0 0
      %1001 = vmatprep.subr.bf16.mxu0 0
      %1002 = vmatpush1.bf16.msra.mxu0 0
      %1003 = vmatprep.mubr.bf16.mxu0 0
      %1004 = vmatmul.mubr.bf16.gmra.mrb[0].mxu0 %v960
      %v1005 = vpop.f32.mrb[0].mxu0
      %v1006 = vadd.f32 0.0, %v1005
      %v1007 = vpop.f32.mrb[0].mxu0
      %v1008 = vadd.f32 0.0, %v1007
      %v1009 = vpop.f32.mrb[0].mxu0
      %v1010 = vpop.f32.mrb[0].mxu0
      %1011 = vdwg.mxu0
      %1012 = vmatprep.subr.bf16.mxu0 0
      %1013 = vmatpush1.bf16.msra.mxu0 %v969
      %1014 = vmatprep.subr.bf16.mxu0 0
      %1015 = vmatpush1.bf16.msra.mxu0 0
      %1016 = vmatprep.subr.bf16.mxu0 0
      %1017 = vmatpush1.bf16.msra.mxu0 0
      %1018 = vmatprep.subr.bf16.mxu0 0
      %1019 = vmatpush1.bf16.msra.mxu0 0
      %1020 = vmatprep.subr.bf16.mxu0 0
      %1021 = vmatpush1.bf16.msra.mxu0 0
      %1022 = vmatprep.subr.bf16.mxu0 0
      %1023 = vmatpush1.bf16.msra.mxu0 0
      %1024 = vmatprep.subr.bf16.mxu0 0
      %1025 = vmatpush1.bf16.msra.mxu0 0
      %1026 = vmatprep.subr.bf16.mxu0 0
      %1027 = vmatpush1.bf16.msra.mxu0 0
      %1028 = vmatprep.subr.bf16.mxu0 0
      %1029 = vmatpush1.bf16.msra.mxu0 0
      %1030 = vmatprep.subr.bf16.mxu0 0
      %1031 = vmatpush1.bf16.msra.mxu0 0
      %1032 = vmatprep.subr.bf16.mxu0 0
      %1033 = vmatpush1.bf16.msra.mxu0 0
      %1034 = vmatprep.subr.bf16.mxu0 0
      %1035 = vmatpush1.bf16.msra.mxu0 0
      %1036 = vmatprep.subr.bf16.mxu0 0
      %1037 = vmatpush1.bf16.msra.mxu0 0
      %1038 = vmatprep.subr.bf16.mxu0 0
      %1039 = vmatpush1.bf16.msra.mxu0 0
      %1040 = vmatprep.subr.bf16.mxu0 0
      %1041 = vmatpush1.bf16.msra.mxu0 0
      %1042 = vmatprep.subr.bf16.mxu0 0
      %1043 = vmatpush1.bf16.msra.mxu0 0
      %1044 = vmatprep.mubr.bf16.mxu0 0
      %1045 = vmatmul.mubr.bf16.gmra.mrb[0].mxu0 %v960
      %v1046 = vpop.f32.mrb[0].mxu0
      %v1047 = vadd.f32 0.0, %v1046
      %v1048 = vpop.f32.mrb[0].mxu0
      %v1049 = vpop.f32.mrb[0].mxu0
      %v1050 = vpop.f32.mrb[0].mxu0
      %1051 = vdwg.mxu0
      %v1052 = vadd.f32 %v927, %v1006
      %v1053 = vadd.f32 %v928, %v1008
      %v1054 = vadd.f32 %v929, %v1047
      %v1055 = vld [vmem:[%s200] sm:$0x3f]
      %s1056 = scalar_lea.vmem %s1, 28
      %v1057 = vld [vmem:[%s1056] sm:$0xf]
      %v1059 = vcombine.high %v1055, %v1055
      %v1061 = vunpack.c.l.s4 1983009808
      %v1062 = vunpack.c.0.s8 %v1061
      %v1063 = vlaneseq
      %v1064 = vshrl.u32 %v1063, 7
      %v1065 = vsub.s32 %v1062, %v1064
      %v1066 = vrot.slane %v1055, %v1065
      %v1068 = vunpack.c.l.s4 1983009808
      %v1069 = vunpack.c.0.s8 %v1068
      %v1070 = vlaneseq
      %v1071 = vshrl.u32 %v1070, 7
      %v1072 = vsub.s32 %v1069, %v1071
      %v1073 = vrot.slane %v1059, %v1072
      %v1074 = vcombine.high %v1066, %v1066
      %1075 = vrot.lane.b32.xlu0 %v1066, 91
      %v1076 = vpop.permute.xlu0 %1075
      %1077 = vrot.lane.b32.xlu0 %v1074, 91
      %v1078 = vpop.permute.xlu0 %1077
      %1079 = vrot.lane.b32.xlu0 %v1073, 91
      %v1080 = vpop.permute.xlu0 %1079
      %vm1081 = vcmask 744448
      %v1082 = vsel %vm1081, %v1076, %v1078
      %v1083 = vsel %vm1081, %v1078, %v1080
      %v1085 = vsel %vm242, %v1057, 0
      %v1088 = vsel %vm246, %v1082, 0
      %v1091 = vsel %vm246, %v1083, 0
      %v1094 = vsel %vm246, %v1080, 0
      %1096 = vmatprep.subr.bf16.mxu0 %v1091
      %1097 = vmatpush1.bf16.msra.mxu0 %v1088
      %1098 = vmatprep.subr.bf16.mxu0 0
      %1099 = vmatpush1.bf16.msra.mxu0 0
      %1100 = vmatprep.subr.bf16.mxu0 0
      %1101 = vmatpush1.bf16.msra.mxu0 0
      %1102 = vmatprep.subr.bf16.mxu0 0
      %1103 = vmatpush1.bf16.msra.mxu0 0
      %1104 = vmatprep.subr.bf16.mxu0 0
      %1105 = vmatpush1.bf16.msra.mxu0 0
      %1106 = vmatprep.subr.bf16.mxu0 0
      %1107 = vmatpush1.bf16.msra.mxu0 0
      %1108 = vmatprep.subr.bf16.mxu0 0
      %1109 = vmatpush1.bf16.msra.mxu0 0
      %1110 = vmatprep.subr.bf16.mxu0 0
      %1111 = vmatpush1.bf16.msra.mxu0 0
      %1112 = vmatprep.subr.bf16.mxu0 0
      %1113 = vmatpush1.bf16.msra.mxu0 0
      %1114 = vmatprep.subr.bf16.mxu0 0
      %1115 = vmatpush1.bf16.msra.mxu0 0
      %1116 = vmatprep.subr.bf16.mxu0 0
      %1117 = vmatpush1.bf16.msra.mxu0 0
      %1118 = vmatprep.subr.bf16.mxu0 0
      %1119 = vmatpush1.bf16.msra.mxu0 0
      %1120 = vmatprep.subr.bf16.mxu0 0
      %1121 = vmatpush1.bf16.msra.mxu0 0
      %1122 = vmatprep.subr.bf16.mxu0 0
      %1123 = vmatpush1.bf16.msra.mxu0 0
      %1124 = vmatprep.subr.bf16.mxu0 0
      %1125 = vmatpush1.bf16.msra.mxu0 0
      %1126 = vmatprep.subr.bf16.mxu0 0
      %1127 = vmatpush1.bf16.msra.mxu0 0
      %1128 = vmatprep.mubr.bf16.mxu0 0
      %1129 = vmatmul.mubr.bf16.gmra.mrb[0].mxu0 %v1085
      %v1130 = vpop.f32.mrb[0].mxu0
      %v1131 = vadd.f32 0.0, %v1130
      %v1132 = vpop.f32.mrb[0].mxu0
      %v1133 = vadd.f32 0.0, %v1132
      %v1134 = vpop.f32.mrb[0].mxu0
      %v1135 = vpop.f32.mrb[0].mxu0
      %1136 = vdwg.mxu0
      %1137 = vmatprep.subr.bf16.mxu0 0
      %1138 = vmatpush1.bf16.msra.mxu0 %v1094
      %1139 = vmatprep.subr.bf16.mxu0 0
      %1140 = vmatpush1.bf16.msra.mxu0 0
      %1141 = vmatprep.subr.bf16.mxu0 0
      %1142 = vmatpush1.bf16.msra.mxu0 0
      %1143 = vmatprep.subr.bf16.mxu0 0
      %1144 = vmatpush1.bf16.msra.mxu0 0
      %1145 = vmatprep.subr.bf16.mxu0 0
      %1146 = vmatpush1.bf16.msra.mxu0 0
      %1147 = vmatprep.subr.bf16.mxu0 0
      %1148 = vmatpush1.bf16.msra.mxu0 0
      %1149 = vmatprep.subr.bf16.mxu0 0
      %1150 = vmatpush1.bf16.msra.mxu0 0
      %1151 = vmatprep.subr.bf16.mxu0 0
      %1152 = vmatpush1.bf16.msra.mxu0 0
      %1153 = vmatprep.subr.bf16.mxu0 0
      %1154 = vmatpush1.bf16.msra.mxu0 0
      %1155 = vmatprep.subr.bf16.mxu0 0
      %1156 = vmatpush1.bf16.msra.mxu0 0
      %1157 = vmatprep.subr.bf16.mxu0 0
      %1158 = vmatpush1.bf16.msra.mxu0 0
      %1159 = vmatprep.subr.bf16.mxu0 0
      %1160 = vmatpush1.bf16.msra.mxu0 0
      %1161 = vmatprep.subr.bf16.mxu0 0
      %1162 = vmatpush1.bf16.msra.mxu0 0
      %1163 = vmatprep.subr.bf16.mxu0 0
      %1164 = vmatpush1.bf16.msra.mxu0 0
      %1165 = vmatprep.subr.bf16.mxu0 0
      %1166 = vmatpush1.bf16.msra.mxu0 0
      %1167 = vmatprep.subr.bf16.mxu0 0
      %1168 = vmatpush1.bf16.msra.mxu0 0
      %1169 = vmatprep.mubr.bf16.mxu0 0
      %1170 = vmatmul.mubr.bf16.gmra.mrb[0].mxu0 %v1085
      %v1171 = vpop.f32.mrb[0].mxu0
      %v1172 = vadd.f32 0.0, %v1171
      %v1173 = vpop.f32.mrb[0].mxu0
      %v1174 = vpop.f32.mrb[0].mxu0
      %v1175 = vpop.f32.mrb[0].mxu0
      %1176 = vdwg.mxu0
      %v1177 = vadd.f32 %v1052, %v1131
      %v1178 = vadd.f32 %v1053, %v1133
      %v1179 = vadd.f32 %v1054, %v1172
      %v1180 = vld [vmem:[%s200] sm:$0x3f]
      %s1181 = scalar_lea.vmem %s1, 32
      %v1182 = vld [vmem:[%s1181] sm:$0xf]
      %v1184 = vcombine.high %v1180, %v1180
      %v1186 = vunpack.c.l.s4 1983009808
      %v1187 = vunpack.c.0.s8 %v1186
      %v1188 = vlaneseq
      %v1189 = vshrl.u32 %v1188, 7
      %v1190 = vsub.s32 %v1187, %v1189
      %v1191 = vrot.slane %v1180, %v1190
      %v1193 = vunpack.c.l.s4 1983009808
      %v1194 = vunpack.c.0.s8 %v1193
      %v1195 = vlaneseq
      %v1196 = vshrl.u32 %v1195, 7
      %v1197 = vsub.s32 %v1194, %v1196
      %v1198 = vrot.slane %v1184, %v1197
      %v1199 = vcombine.high %v1191, %v1191
      %1200 = vrot.lane.b32.xlu0 %v1191, 90
      %v1201 = vpop.permute.xlu0 %1200
      %1202 = vrot.lane.b32.xlu0 %v1199, 90
      %v1203 = vpop.permute.xlu0 %1202
      %1204 = vrot.lane.b32.xlu0 %v1198, 90
      %v1205 = vpop.permute.xlu0 %1204
      %vm1206 = vcmask 736256
      %v1207 = vsel %vm1206, %v1201, %v1203
      %v1208 = vsel %vm1206, %v1203, %v1205
      %v1210 = vsel %vm242, %v1182, 0
      %v1213 = vsel %vm246, %v1207, 0
      %v1216 = vsel %vm246, %v1208, 0
      %v1219 = vsel %vm246, %v1205, 0
      %1221 = vmatprep.subr.bf16.mxu0 %v1216
      %1222 = vmatpush1.bf16.msra.mxu0 %v1213
      %1223 = vmatprep.subr.bf16.mxu0 0
      %1224 = vmatpush1.bf16.msra.mxu0 0
      %1225 = vmatprep.subr.bf16.mxu0 0
      %1226 = vmatpush1.bf16.msra.mxu0 0
      %1227 = vmatprep.subr.bf16.mxu0 0
      %1228 = vmatpush1.bf16.msra.mxu0 0
      %1229 = vmatprep.subr.bf16.mxu0 0
      %1230 = vmatpush1.bf16.msra.mxu0 0
      %1231 = vmatprep.subr.bf16.mxu0 0
      %1232 = vmatpush1.bf16.msra.mxu0 0
      %1233 = vmatprep.subr.bf16.mxu0 0
      %1234 = vmatpush1.bf16.msra.mxu0 0
      %1235 = vmatprep.subr.bf16.mxu0 0
      %1236 = vmatpush1.bf16.msra.mxu0 0
      %1237 = vmatprep.subr.bf16.mxu0 0
      %1238 = vmatpush1.bf16.msra.mxu0 0
      %1239 = vmatprep.subr.bf16.mxu0 0
      %1240 = vmatpush1.bf16.msra.mxu0 0
      %1241 = vmatprep.subr.bf16.mxu0 0
      %1242 = vmatpush1.bf16.msra.mxu0 0
      %1243 = vmatprep.subr.bf16.mxu0 0
      %1244 = vmatpush1.bf16.msra.mxu0 0
      %1245 = vmatprep.subr.bf16.mxu0 0
      %1246 = vmatpush1.bf16.msra.mxu0 0
      %1247 = vmatprep.subr.bf16.mxu0 0
      %1248 = vmatpush1.bf16.msra.mxu0 0
      %1249 = vmatprep.subr.bf16.mxu0 0
      %1250 = vmatpush1.bf16.msra.mxu0 0
      %1251 = vmatprep.subr.bf16.mxu0 0
      %1252 = vmatpush1.bf16.msra.mxu0 0
      %1253 = vmatprep.mubr.bf16.mxu0 0
      %1254 = vmatmul.mubr.bf16.gmra.mrb[0].mxu0 %v1210
      %v1255 = vpop.f32.mrb[0].mxu0
      %v1256 = vadd.f32 0.0, %v1255
      %v1257 = vpop.f32.mrb[0].mxu0
      %v1258 = vadd.f32 0.0, %v1257
      %v1259 = vpop.f32.mrb[0].mxu0
      %v1260 = vpop.f32.mrb[0].mxu0
      %1261 = vdwg.mxu0
      %1262 = vmatprep.subr.bf16.mxu0 0
      %1263 = vmatpush1.bf16.msra.mxu0 %v1219
      %1264 = vmatprep.subr.bf16.mxu0 0
      %1265 = vmatpush1.bf16.msra.mxu0 0
      %1266 = vmatprep.subr.bf16.mxu0 0
      %1267 = vmatpush1.bf16.msra.mxu0 0
      %1268 = vmatprep.subr.bf16.mxu0 0
      %1269 = vmatpush1.bf16.msra.mxu0 0
      %1270 = vmatprep.subr.bf16.mxu0 0
      %1271 = vmatpush1.bf16.msra.mxu0 0
      %1272 = vmatprep.subr.bf16.mxu0 0
      %1273 = vmatpush1.bf16.msra.mxu0 0
      %1274 = vmatprep.subr.bf16.mxu0 0
      %1275 = vmatpush1.bf16.msra.mxu0 0
      %1276 = vmatprep.subr.bf16.mxu0 0
      %1277 = vmatpush1.bf16.msra.mxu0 0
      %1278 = vmatprep.subr.bf16.mxu0 0
      %1279 = vmatpush1.bf16.msra.mxu0 0
      %1280 = vmatprep.subr.bf16.mxu0 0
      %1281 = vmatpush1.bf16.msra.mxu0 0
      %1282 = vmatprep.subr.bf16.mxu0 0
      %1283 = vmatpush1.bf16.msra.mxu0 0
      %1284 = vmatprep.subr.bf16.mxu0 0
      %1285 = vmatpush1.bf16.msra.mxu0 0
      %1286 = vmatprep.subr.bf16.mxu0 0
      %1287 = vmatpush1.bf16.msra.mxu0 0
      %1288 = vmatprep.subr.bf16.mxu0 0
      %1289 = vmatpush1.bf16.msra.mxu0 0
      %1290 = vmatprep.subr.bf16.mxu0 0
      %1291 = vmatpush1.bf16.msra.mxu0 0
      %1292 = vmatprep.subr.bf16.mxu0 0
      %1293 = vmatpush1.bf16.msra.mxu0 0
      %1294 = vmatprep.mubr.bf16.mxu0 0
      %1295 = vmatmul.mubr.bf16.gmra.mrb[0].mxu0 %v1210
      %v1296 = vpop.f32.mrb[0].mxu0
      %v1297 = vadd.f32 0.0, %v1296
      %v1298 = vpop.f32.mrb[0].mxu0
      %v1299 = vpop.f32.mrb[0].mxu0
      %v1300 = vpop.f32.mrb[0].mxu0
      %1301 = vdwg.mxu0
      %v1302 = vadd.f32 %v1177, %v1256
      %v1303 = vadd.f32 %v1178, %v1258
      %v1304 = vadd.f32 %v1179, %v1297
      %v1305 = vpack.c.bf16 %v1302, %v1302
      %v1306 = vpack.c.bf16 %v1303, %v1303
      %v1307 = vpack.c.bf16 %v1304, %v1304
      %v1311 = vunpack.c.l.b16 %v1305
      %v1312 = vunpack.c.l.b16 %v1306
      %v1313 = vunpack.c.l.b16 %v1307
      %v1314 = vpack.c.b16 %v1312, %v1311
      %v1315 = vpack.c.b16 %v1313, %v1313
      %1318 = vst [vmem:[%s205] sm:$0xff] %v1314
      %vm1319 = vcmask 257024
      %1320 = vst.msk [vmem:[%s205 + $0x8] sm:$0xf] %vm1319, %v1315
      %v1321 = vld [vmem:[%s2] sm:$0x7]
      %v1323 = vlaneseq
      %v1324 = vshrl.u32 %v1323, 7
      %v1325 = vsub.s32 0, %v1324
      %v1326 = vrot.slane %v1321, %v1325
      %v1327 = vlaneseq
      %v1328 = vshrl.u32 %v1327, 7
      %v1329 = vsub.s32 1, %v1328
      %v1330 = vrot.slane %v1321, %v1329
      %v1331 = vlaneseq
      %v1332 = vshrl.u32 %v1331, 7
      %v1333 = vsub.s32 2, %v1332
      %v1334 = vrot.slane %v1321, %v1333
      %v1338 = vmul.f32 %v1302, %v1326
      %v1339 = vmul.f32 %v1303, %v1330
      %v1340 = vmul.f32 %v1304, %v1334
      %v1341 = vadd.f32 %v1338, %v1339
      %vm1342 = vcmask 261120
      %v1343 = vsel %vm1342, %v1340, 0.0
      %v1344 = vadd.f32 %v1341, %v1343
      %1345 = vadd.xlane.f32.xlu0 %v1344
      %v1346 = vpop.xlane.xlu0 %1345
      %vm1347 = vcmask 7168
      %1348 = vst.msk [vmem:[%s210] sm:$0xff] %vm1347, %v1346
      %v1349 = vmul.f32 %v1338, %v1302
      %v1350 = vmul.f32 %v1339, %v1303
      %v1351 = vmul.f32 %v1340, %v1304
      %v1352 = vadd.f32 %v1349, %v1350
      %v1353 = vsel %vm1342, %v1351, 0.0
      %v1354 = vadd.f32 %v1352, %v1353
      %1355 = vadd.xlane.f32.xlu0 %v1354
      %v1356 = vpop.xlane.xlu0 %1355
      %1357 = vst.msk [vmem:[%s210 + $0x8] sm:$0xff] %vm1347, %v1356
      %p1358 = scmp.lt.s32.totalorder %s16, 1
      %s1359 = scalar_select %p1358, %s16, 1
      %s1360 = smul.addr %s1359, 3
      %s1361 = smul.addr %s1360, 4
      %s1362 = scalar_lea.vmem %s3, %s1361
      %p1363 = scmp.lt.s32.totalorder %s16, 1
      %s1364 = scalar_select %p1363, %s16, 1
      %s1365 = smul.addr %s1364, 2
      %s1366 = smul.addr %s1365, 8
      %s1367 = scalar_lea.vmem %s4, %s1366
      // Predicated region
      $region33: #{basic_conv_forward.2} parent=31 // pred_check
        %p1368 = pneg %p102
      $region34: #{basic_conv_forward.2} parent=31 // pred_check_branch
        %1370 = sbr.rel (%p1368) target = $region36
      $region35: #{basic_conv_forward.2} parent=31 // pred_region
        _
      $region36: #{basic_conv_forward.2} parent=31 // pred_fallthru
        _
      // Predicated region
      $region37: #{basic_conv_forward.2} parent=31 // pred_check
        %p1371 = pneg %p128
      $region38: #{basic_conv_forward.2} parent=31 // pred_check_branch
        %1373 = sbr.rel (%p1371) target = $region40
      $region39: #{basic_conv_forward.2} parent=31 // pred_region
        _
      $region40: #{basic_conv_forward.2} parent=31 // pred_fallthru
        _
    $region32: #{basic_conv_forward.2} parent=5 // pred_fallthru
      _
    %p1374 = scmp.le.s32.totalorder 2, %s11
    // Predicated region
    $region41: #{basic_conv_forward.2} parent=5 // pred_check
      %p1375 = pneg %p1374
    $region42: #{basic_conv_forward.2} parent=5 // pred_check_branch
      %1377 = sbr.rel (%p1375) target = $region44
    $region43: #{basic_conv_forward.2} parent=5 // pred_region
      %s1378 = ssub.s32 %s11, 2
      // Predicated region
      $region45: #{basic_conv_forward.2} parent=43 // pred_check
        %p1379 = pneg %p108
      $region46: #{basic_conv_forward.2} parent=43 // pred_check_branch
        %1381 = sbr.rel (%p1379) target = $region48
      $region47: #{basic_conv_forward.2} parent=43 // pred_region
        %p1382 = scmp.lt.s32.totalorder %s17, 1
        %s1383 = scalar_select %p1382, %s17, 1
        %s1384 = smul.addr %s1383, 3
        %s1385 = smul.addr %s1384, 4
        %s1386 = scalar_lea.vmem %s3, %s1385
      $region48: #{basic_conv_forward.2} parent=43 // pred_fallthru
        _
      // Predicated region
      $region49: #{basic_conv_forward.2} parent=43 // pred_check
        %p1387 = pneg %p134
      $region50: #{basic_conv_forward.2} parent=43 // pred_check_branch
        %1389 = sbr.rel (%p1387) target = $region52
      $region51: #{basic_conv_forward.2} parent=43 // pred_region
        %p1390 = scmp.lt.s32.totalorder %s17, 1
        %s1391 = scalar_select %p1390, %s17, 1
        %s1392 = smul.addr %s1391, 2
        %s1393 = smul.addr %s1392, 8
        %s1394 = scalar_lea.vmem %s4, %s1393
      $region52: #{basic_conv_forward.2} parent=43 // pred_fallthru
        _
    $region44: #{basic_conv_forward.2} parent=5 // pred_fallthru
      _
  $region6: #{basic_conv_forward.2} parent=0 // loop_footer
    %s15 = sadd.s32 1, %s11
  $region7: #{basic_conv_forward.2} parent=0 // loop_footer_branch
    %10 = sbr.rel target = $region3
  $region8: #{basic_conv_forward.2} parent=0 // loop_exit
    _

</llo_original>
